<compile_context>
chip_gen: v6e
topology: v6e:2x2x1
jax: 0.10.0
libtpu: 0.0.40
codegen_flags: <defaults>
</compile_context>

<pallas_src>
import functools

import jax
import jax.numpy as jnp
from jax import lax
from jax.experimental import pallas as pl
from jax.experimental.pallas import tpu as pltpu

NEG_SLOPE = 0.01  # PyTorch LeakyReLU default


def _round_up(v, m):
    return (v + m - 1) // m * m


def _leaky(v):
    return jnp.where(v > 0, v, NEG_SLOPE * v)


def _gram_f32(a, b):
    """a @ b.T in f32 (selection-critical similarity)."""
    return lax.dot_general(a, b, (((1,), (1,)), ((), ())),
                           preferred_element_type=jnp.float32)


def _topk_softmax(sim, k):
    """Row-wise: keep the top-k entries of `sim`, softmax over them (k static).

    Reuses the top-1 row max as the softmax max (the kept set always contains
    it).  Exact divide (no approx reciprocal) for parity with the reference.
    TODO(synk): ties keep all equal entries (can keep >k), unlike torch.topk
    which keeps exactly k.
    """
    k = min(k, sim.shape[-1])
    m0 = jnp.max(sim, axis=-1, keepdims=True)      # top-1 == softmax max
    kth = m0
    cur = sim
    for _ in range(k - 1):
        cur = jnp.where(cur >= kth, -jnp.inf, cur)
        kth = jnp.max(cur, axis=-1, keepdims=True)
    e = jnp.where(sim >= kth, jnp.exp(sim - m0), 0.0)
    denom = jnp.sum(e, axis=-1, keepdims=True)      # >= 1 (top-1 always kept)
    return e / denom


# --------------------------------------------------------------------------
# Stage 1: CommonRelationModule.  Row-tiled over nodes; full-N x as key side.
# TODO(synk): CommonRelationModule source not provided; implemented as a
# top-k similarity graph + shared MLP producing backcast [N,S] / forecast [N,M].
# --------------------------------------------------------------------------
def common_kernel(xq_ref, xk_ref, wch_ref, bch_ref, wcbf_ref, bcbf_ref,
                  r_ref, f_ref, *, k, seq_len):
    f32 = jnp.float32
    bf16 = jnp.bfloat16

    xq = xq_ref[...]                                     # [TN, S] f32 (query tile)
    xk = xk_ref[...]                                     # [N,  S] f32 (all keys)

    sim = _gram_f32(xq, xk)                              # [TN, N] f32
    a = _topk_softmax(sim, k)
    x_agg = jnp.dot(a.astype(bf16), xk.astype(bf16),
                    preferred_element_type=f32)          # [TN, S]
    theta = _leaky(jnp.dot((xq + x_agg).astype(bf16), wch_ref[...],
                           preferred_element_type=f32) + bch_ref[...])   # [TN, H]
    # fused backcast|forecast matmul: [TN, H] @ [H, S+M]
    bf_cat = jnp.dot(theta.astype(bf16), wcbf_ref[...],
                     preferred_element_type=f32) + bcbf_ref[...]         # [TN, S+M]
    backcast = bf_cat[:, :seq_len]
    forecast = bf_cat[:, seq_len:]

    r_ref[...] = xq - backcast                           # residual [TN, S]
    f_ref[...] = forecast                                # forecast [TN, M]


# --------------------------------------------------------------------------
# Stage 2: HiddenRelationModule + first Linear of the output head.
# Row-tiled over nodes; similarity restricted to actuator columns (no mask).
# TODO(synk): HiddenRelationModule source not provided; implemented as
# num_graph learned projections -> top-k graphs over actuator neighbours -> MLP.
# --------------------------------------------------------------------------
def hidden_kernel(rq_ref, fq_ref, ract_ref, p_ref, wgh_ref, bgh_ref,
                  who_ref, bho_ref, w1_ref, b1_ref, s_ref, *, k, num_graph):
    f32 = jnp.float32
    bf16 = jnp.bfloat16

    rq = rq_ref[...]                                     # [TN, S] f32 (query tile)
    ract = ract_ref[...]                                 # [Na, S] f32 (actuator keys)
    ract_b = ract.astype(bf16)

    h_sum = None
    # num_graph is small (2); static unroll is fine.  TODO(synk): for larger
    # num_graph switch to lax.fori_loop with stacked weights to bound live ranges.
    for g in range(num_graph):
        pg = p_ref[g]                                    # [S, S] f32
        zq = jnp.dot(rq, pg, preferred_element_type=f32)       # [TN, S] f32
        za = jnp.dot(ract, pg, preferred_element_type=f32)     # [Na, S] f32
        sim = _gram_f32(zq, za)                                 # [TN, Na]
        a = _topk_softmax(sim, k)
        agg = jnp.dot(a.astype(bf16), ract_b,
                      preferred_element_type=f32)               # [TN, S]
        h = _leaky(jnp.dot(agg.astype(bf16), wgh_ref[g],
                           preferred_element_type=f32) + bgh_ref[g])   # [TN, H]
        h_sum = h if h_sum is None else h_sum + h
    # who is pre-divided by num_graph (folds the mean-over-graphs in).
    o = jnp.dot(h_sum.astype(bf16), who_ref[...],
                preferred_element_type=f32) + bho_ref[...]              # [TN, M]

    # output_layer Linear(M, H) fused here (elementwise-free, per-row).
    s_ref[...] = jnp.dot((o + fq_ref[...]).astype(bf16), w1_ref[...],
                         preferred_element_type=f32) + b1_ref[...]      # [TN, H]


# --------------------------------------------------------------------------
# Stage 3: BatchNorm1d (full-batch stats) -> LeakyReLU -> Linear(H, 1) -> .T
# Gridless: BN statistics are a full-N reduction over the node axis.
# --------------------------------------------------------------------------
def head_kernel(s_ref, gamma_ref, beta_ref, w2t_ref, b2_ref, out_ref):
    s = s_ref[...]                                       # [N, H] f32
    # BatchNorm1d training mode: batch (node-axis) stats, biased var, eps=1e-5.
    mean = jnp.mean(s, axis=0, keepdims=True)
    var = jnp.mean((s - mean) ** 2, axis=0, keepdims=True)
    s = (s - mean) * lax.rsqrt(var + 1e-5) * gamma_ref[...] + beta_ref[...]
    s = _leaky(s)
    # Final Linear(H, 1) lane-dense on the MXU: [1, H] x [N, H]^T -> [1, N].
    out_ref[...] = lax.dot_general(w2t_ref[...], s.astype(jnp.bfloat16),
                                   (((1,), (1,)), ((), ())),
                                   preferred_element_type=jnp.float32) + b2_ref[...]


# --------------------------------------------------------------------------
# Parameter init / one-time packing
# --------------------------------------------------------------------------
def _kaiming_uniform(key, shape, fan_in):
    # nn.init.kaiming_uniform_(..., nonlinearity='leaky_relu') default a=0:
    # bound = sqrt(2) * sqrt(3 / fan_in) = sqrt(6 / fan_in)
    bound = (6.0 / fan_in) ** 0.5
    return jax.random.uniform(key, shape, jnp.float32, -bound, bound)


def init_params(key, seq_len, hidden_dim, middle_dim, num_graph):
    keys = jax.random.split(key, 12)
    S, H, M, G = seq_len, hidden_dim, middle_dim, num_graph
    return dict(
        # CommonRelationModule
        wch=_kaiming_uniform(keys[0], (S, H), S),
        bch=jnp.zeros((1, H), jnp.float32),
        wcb=_kaiming_uniform(keys[1], (H, S), H),
        bcb=jnp.zeros((1, S), jnp.float32),
        wcf=_kaiming_uniform(keys[2], (H, M), H),
        bcf=jnp.zeros((1, M), jnp.float32),
        # HiddenRelationModule
        p=_kaiming_uniform(keys[3], (G, S, S), S),
        wgh=_kaiming_uniform(keys[4], (G, S, H), S),
        bgh=jnp.zeros((G, 1, H), jnp.float32),
        who=_kaiming_uniform(keys[5], (H, M), H),
        bho=jnp.zeros((1, M), jnp.float32),
        # output_layer
        w1=_kaiming_uniform(keys[6], (M, H), M),
        b1=jnp.zeros((1, H), jnp.float32),
        gamma=jnp.ones((1, H), jnp.float32),
        beta=jnp.zeros((1, H), jnp.float32),
        w2t=_kaiming_uniform(keys[7], (1, H), H),   # Linear(H, 1) weight, transposed
        b2=jnp.zeros((1, 1), jnp.float32),
    )


def pack_params(params, num_graph):
    """One-time weight packing (hoisted out of the per-call forward path)."""
    bf16 = jnp.bfloat16
    f32 = jnp.float32
    # backcast | forecast fused along the output dim
    wcbf = jnp.concatenate([params["wcb"], params["wcf"]], axis=1)   # [H, S+M]
    bcbf = jnp.concatenate([params["bcb"], params["bcf"]], axis=1)   # [1, S+M]
    return dict(
        wch=params["wch"].astype(bf16), bch=params["bch"].astype(f32),
        wcbf=wcbf.astype(bf16), bcbf=bcbf.astype(f32),
        p=params["p"].astype(f32),                        # selection-critical: keep f32
        wgh=params["wgh"].astype(bf16), bgh=params["bgh"].astype(f32),
        who_div=(params["who"] / float(num_graph)).astype(bf16),     # fold 1/G mean
        bho=params["bho"].astype(f32),
        w1=params["w1"].astype(bf16), b1=params["b1"].astype(f32),
        gamma=params["gamma"].astype(f32), beta=params["beta"].astype(f32),
        w2t=params["w2t"].astype(bf16), b2=params["b2"].astype(f32),
    )


# --------------------------------------------------------------------------
# Forward
# --------------------------------------------------------------------------
@functools.partial(jax.jit, static_argnames=("k", "num_graph", "node_tile"))
def ics_forward(x, actuator_indices, packed, *, k, num_graph, node_tile=128):
    """x: [num_nodes, seq_len] -> output [1, num_nodes] (matches PyTorch o.T).

    node_tile=128 is sized for v7x's 64 MiB VMEM; 256 is fine on v5e/v6e.
    """
    f32 = jnp.float32
    n, seq_len = x.shape
    hidden_dim = packed["wch"].shape[1]
    middle_dim = packed["who_div"].shape[1]
    n_act = actuator_indices.shape[0]

    x = x.astype(f32)
    tn = min(node_tile, _round_up(n, 8))       # tile rows, multiple of 8
    n_pad = _round_up(n, tn)
    x_pad = jnp.pad(x, ((0, n_pad - n), (0, 0))) if n_pad != n else x
    grid = (n_pad // tn,)
    vmem_limit = 48 * 1024 * 1024

    def _nbytes(a):
        return a.size * a.dtype.itemsize

    # ---------------- Stage 1: common relation (row-tiled, parallel) ---------
    cost1 = pl.CostEstimate(
        flops=int(4 * n_pad * n * seq_len
                  + 2 * n_pad * seq_len * hidden_dim
                  + 2 * n_pad * hidden_dim * (seq_len + middle_dim)),
        transcendentals=int(n_pad * n),
        bytes_accessed=int(4 * (2 * n_pad * seq_len + n * seq_len + n_pad * middle_dim)
                           + _nbytes(packed["wch"]) + _nbytes(packed["wcbf"])))
    r_pad, f_pad = pl.pallas_call(
        functools.partial(common_kernel, k=k, seq_len=seq_len),
        out_shape=(jax.ShapeDtypeStruct((n_pad, seq_len), f32),
                   jax.ShapeDtypeStruct((n_pad, middle_dim), f32)),
        grid=grid,
        in_specs=[
            pl.BlockSpec((tn, seq_len), lambda i: (i, 0)),        # x query tile
            pl.BlockSpec((n, seq_len), lambda i: (0, 0)),         # full-N keys
            pl.BlockSpec(packed["wch"].shape, lambda i: (0, 0)),
            pl.BlockSpec(packed["bch"].shape, lambda i: (0, 0)),
            pl.BlockSpec(packed["wcbf"].shape, lambda i: (0, 0)),
            pl.BlockSpec(packed["bcbf"].shape, lambda i: (0, 0)),
        ],
        out_specs=(pl.BlockSpec((tn, seq_len), lambda i: (i, 0)),
                   pl.BlockSpec((tn, middle_dim), lambda i: (i, 0))),
        compiler_params=pltpu.CompilerParams(
            dimension_semantics=("parallel",), vmem_limit_bytes=vmem_limit),
        cost_estimate=cost1,
    )(x_pad, x, packed["wch"], packed["bch"], packed["wcbf"], packed["bcbf"])

    # glue: gather actuator residual rows once (replaces the -1e30 mask; the
    # hidden-graph work now scales with N_act, not N).
    r_act = r_pad[actuator_indices]                                 # [Na, S]

    # ---------------- Stage 2: hidden relation + Linear(M,H) (row-tiled) -----
    n_tiles = n_pad // tn
    cost2 = pl.CostEstimate(
        flops=int(num_graph * (2 * n_pad * seq_len * seq_len
                               + 2 * n_tiles * n_act * seq_len * seq_len
                               + 4 * n_pad * n_act * seq_len
                               + 2 * n_pad * seq_len * hidden_dim)
                  + 2 * n_pad * hidden_dim * middle_dim
                  + 2 * n_pad * middle_dim * hidden_dim),
        transcendentals=int(num_graph * n_pad * n_act),
        bytes_accessed=int(4 * (n_pad * seq_len + n_pad * middle_dim
                                + n_act * seq_len + n_pad * hidden_dim)
                           + _nbytes(packed["p"]) + _nbytes(packed["wgh"])
                           + _nbytes(packed["who_div"]) + _nbytes(packed["w1"])))
    s_pre_pad = pl.pallas_call(
        functools.partial(hidden_kernel, k=k, num_graph=num_graph),
        out_shape=jax.ShapeDtypeStruct((n_pad, hidden_dim), f32),
        grid=grid,
        in_specs=[
            pl.BlockSpec((tn, seq_len), lambda i: (i, 0)),        # r tile
            pl.BlockSpec((tn, middle_dim), lambda i: (i, 0)),     # forecast tile
            pl.BlockSpec((n_act, seq_len), lambda i: (0, 0)),     # actuator keys
            pl.BlockSpec(packed["p"].shape, lambda i: (0, 0, 0)),
            pl.BlockSpec(packed["wgh"].shape, lambda i: (0, 0, 0)),
            pl.BlockSpec(packed["bgh"].shape, lambda i: (0, 0, 0)),
            pl.BlockSpec(packed["who_div"].shape, lambda i: (0, 0)),
            pl.BlockSpec(packed["bho"].shape, lambda i: (0, 0)),
            pl.BlockSpec(packed["w1"].shape, lambda i: (0, 0)),
            pl.BlockSpec(packed["b1"].shape, lambda i: (0, 0)),
        ],
        out_specs=pl.BlockSpec((tn, hidden_dim), lambda i: (i, 0)),
        compiler_params=pltpu.CompilerParams(
            dimension_semantics=("parallel",), vmem_limit_bytes=vmem_limit),
        cost_estimate=cost2,
    )(r_pad, f_pad, r_act, packed["p"], packed["wgh"], packed["bgh"],
      packed["who_div"], packed["bho"], packed["w1"], packed["b1"])

    s_pre = s_pre_pad[:n] if n_pad != n else s_pre_pad              # drop padding

    # ---------------- Stage 3: BatchNorm (full-N stats) + head (gridless) ----
    out = pl.pallas_call(
        head_kernel,
        out_shape=jax.ShapeDtypeStruct((1, n), f32),
        in_specs=[pl.BlockSpec(memory_space=pltpu.MemorySpace.VMEM)] * 5,
        out_specs=pl.BlockSpec(memory_space=pltpu.MemorySpace.VMEM),
        compiler_params=pltpu.CompilerParams(vmem_limit_bytes=vmem_limit),
    )(s_pre, packed["gamma"], packed["beta"], packed["w2t"], packed["b2"])
    return out  # lane-dense [1, num_nodes], matches the reference o.T


if __name__ == "__main__":
    # Small deterministic problem: 8 nodes, seq 8, hidden 32, middle 16, k=3, 2 graphs.
    N, S, H, M, K, G = 8, 8, 32, 16, 3, 2

    root = jax.random.PRNGKey(0)
    kx, kp = jax.random.split(root)
    x = jax.random.normal(kx, (N, S), jnp.float32)
    actuator_indices = jnp.array([0, 2, 5], dtype=jnp.int32)
    params = init_params(kp, S, H, M, G)
    packed = pack_params(params, G)          # one-time packing, outside forward

    out = ics_forward(x, actuator_indices, packed, k=K, num_graph=G)
    out = jax.block_until_ready(out)

    assert out.shape == (1, N), out.shape
    assert bool(jnp.all(jnp.isfinite(out)))
    print("KERNEL_OK")
</pallas_src>

<mosaic_0001>
module attributes {stable_mosaic.version = 11 : i64} {
  func.func @common_kernel(%arg0: i32, %arg1: memref<8x8xf32, #tpu.memory_space<vmem>>, %arg2: memref<8x8xf32, #tpu.memory_space<vmem>>, %arg3: memref<8x32xbf16, #tpu.memory_space<vmem>>, %arg4: memref<1x32xf32, #tpu.memory_space<vmem>>, %arg5: memref<32x24xbf16, #tpu.memory_space<vmem>>, %arg6: memref<1x24xf32, #tpu.memory_space<vmem>>, %arg7: memref<8x8xf32, #tpu.memory_space<vmem>>, %arg8: memref<8x16xf32, #tpu.memory_space<vmem>>) attributes {dimension_semantics = [#tpu.dimension_semantics<parallel>], iteration_bounds = array<i64: 1>, scalar_prefetch = 0 : i64, scratch_operands = 0 : i64, tpu.core_type = #tpu.core_type<tc>, window_params = [{transform_indices = @transform_0, window_bounds = array<i64: 8, 8>}, {pipeline_mode = #tpu.pipeline_mode<synchronous>, transform_indices = @transform_1, window_bounds = array<i64: 8, 8>}, {pipeline_mode = #tpu.pipeline_mode<synchronous>, transform_indices = @transform_2, window_bounds = array<i64: 8, 32>}, {pipeline_mode = #tpu.pipeline_mode<synchronous>, transform_indices = @transform_3, window_bounds = array<i64: 1, 32>}, {pipeline_mode = #tpu.pipeline_mode<synchronous>, transform_indices = @transform_4, window_bounds = array<i64: 32, 24>}, {pipeline_mode = #tpu.pipeline_mode<synchronous>, transform_indices = @transform_5, window_bounds = array<i64: 1, 24>}, {transform_indices = @transform_6, window_bounds = array<i64: 8, 8>}, {transform_indices = @transform_7, window_bounds = array<i64: 8, 16>}]} {
    %c0 = arith.constant 0 : index
    %c0_0 = arith.constant 0 : index
    %0 = vector.load %arg1[%c0, %c0_0] : memref<8x8xf32, #tpu.memory_space<vmem>>, vector<8x8xf32>
    %c0_1 = arith.constant 0 : index
    %c0_2 = arith.constant 0 : index
    %1 = vector.load %arg2[%c0_1, %c0_2] : memref<8x8xf32, #tpu.memory_space<vmem>>, vector<8x8xf32>
    %cst = arith.constant dense<0.000000e+00> : vector<8x8xf32>
    %2 = tpu.matmul %0, %1, %cst {dimension_numbers = #tpu.dot_dimension_numbers<[1], [1], [0], [0], [0, 0, 1, 0], [], []>} : vector<8x8xf32>, vector<8x8xf32>, vector<8x8xf32> -> vector<8x8xf32>
    %cst_3 = arith.constant dense<0xFF800000> : vector<8xf32>
    %3 = vector.multi_reduction <maximumf>, %2, %cst_3 [1] : vector<8x8xf32> to vector<8xf32>
    %4 = vector.shape_cast %3 : vector<8xf32> to vector<8x1xf32>
    %5 = vector.broadcast %4 : vector<8x1xf32> to vector<8x8xf32>
    %6 = arith.cmpf oge, %2, %5 : vector<8x8xf32>
    %cst_4 = arith.constant 0xFF800000 : f32
    %7 = vector.broadcast %cst_4 : f32 to vector<8x8xf32>
    %8 = arith.select %6, %7, %2 : vector<8x8xi1>, vector<8x8xf32>
    %cst_5 = arith.constant dense<0xFF800000> : vector<8xf32>
    %9 = vector.multi_reduction <maximumf>, %8, %cst_5 [1] : vector<8x8xf32> to vector<8xf32>
    %10 = vector.shape_cast %9 : vector<8xf32> to vector<8x1xf32>
    %11 = vector.broadcast %10 : vector<8x1xf32> to vector<8x8xf32>
    %12 = arith.cmpf oge, %8, %11 : vector<8x8xf32>
    %cst_6 = arith.constant 0xFF800000 : f32
    %13 = vector.broadcast %cst_6 : f32 to vector<8x8xf32>
    %14 = arith.select %12, %13, %8 : vector<8x8xi1>, vector<8x8xf32>
    %cst_7 = arith.constant dense<0xFF800000> : vector<8xf32>
    %15 = vector.multi_reduction <maximumf>, %14, %cst_7 [1] : vector<8x8xf32> to vector<8xf32>
    %16 = vector.shape_cast %15 : vector<8xf32> to vector<8x1xf32>
    %17 = vector.broadcast %16 : vector<8x1xf32> to vector<8x8xf32>
    %18 = arith.cmpf oge, %2, %17 : vector<8x8xf32>
    %19 = vector.broadcast %4 : vector<8x1xf32> to vector<8x8xf32>
    %20 = arith.subf %2, %19 : vector<8x8xf32>
    %21 = math.exp %20 : vector<8x8xf32>
    %cst_8 = arith.constant 0.000000e+00 : f32
    %22 = vector.broadcast %cst_8 : f32 to vector<8x8xf32>
    %23 = arith.select %18, %21, %22 : vector<8x8xi1>, vector<8x8xf32>
    %cst_9 = arith.constant dense<0.000000e+00> : vector<8xf32>
    %24 = vector.multi_reduction <add>, %23, %cst_9 [1] : vector<8x8xf32> to vector<8xf32>
    %25 = vector.shape_cast %24 : vector<8xf32> to vector<8x1xf32>
    %26 = vector.broadcast %25 : vector<8x1xf32> to vector<8x8xf32>
    %27 = arith.divf %23, %26 : vector<8x8xf32>
    %28 = arith.truncf %27 : vector<8x8xf32> to vector<8x8xbf16>
    %29 = arith.truncf %1 : vector<8x8xf32> to vector<8x8xbf16>
    %cst_10 = arith.constant dense<0.000000e+00> : vector<8x8xf32>
    %30 = tpu.matmul %28, %29, %cst_10 {dimension_numbers = #tpu.dot_dimension_numbers<[1], [0], [0], [1], [0, 0, 1, 1], [], []>} : vector<8x8xbf16>, vector<8x8xbf16>, vector<8x8xf32> -> vector<8x8xf32>
    %31 = arith.addf %0, %30 : vector<8x8xf32>
    %32 = arith.truncf %31 : vector<8x8xf32> to vector<8x8xbf16>
    %c0_11 = arith.constant 0 : index
    %c0_12 = arith.constant 0 : index
    %33 = vector.load %arg3[%c0_11, %c0_12] : memref<8x32xbf16, #tpu.memory_space<vmem>>, vector<8x32xbf16>
    %cst_13 = arith.constant dense<0.000000e+00> : vector<8x32xf32>
    %34 = tpu.matmul %32, %33, %cst_13 {dimension_numbers = #tpu.dot_dimension_numbers<[1], [0], [0], [1], [0, 0, 1, 1], [], []>} : vector<8x8xbf16>, vector<8x32xbf16>, vector<8x32xf32> -> vector<8x32xf32>
    %c0_14 = arith.constant 0 : index
    %c0_15 = arith.constant 0 : index
    %35 = vector.load %arg4[%c0_14, %c0_15] : memref<1x32xf32, #tpu.memory_space<vmem>>, vector<1x32xf32>
    %36 = vector.broadcast %35 : vector<1x32xf32> to vector<8x32xf32>
    %37 = arith.addf %34, %36 : vector<8x32xf32>
    %cst_16 = arith.constant 0.000000e+00 : f32
    %38 = vector.broadcast %cst_16 : f32 to vector<8x32xf32>
    %39 = arith.cmpf ogt, %37, %38 : vector<8x32xf32>
    %cst_17 = arith.constant 0.00999999977 : f32
    %40 = vector.broadcast %cst_17 : f32 to vector<8x32xf32>
    %41 = arith.mulf %40, %37 : vector<8x32xf32>
    %42 = arith.select %39, %37, %41 : vector<8x32xi1>, vector<8x32xf32>
    %43 = arith.truncf %42 : vector<8x32xf32> to vector<8x32xbf16>
    %c0_18 = arith.constant 0 : index
    %c0_19 = arith.constant 0 : index
    %44 = vector.load %arg5[%c0_18, %c0_19] : memref<32x24xbf16, #tpu.memory_space<vmem>>, vector<32x24xbf16>
    %cst_20 = arith.constant dense<0.000000e+00> : vector<8x24xf32>
    %45 = tpu.matmul %43, %44, %cst_20 {dimension_numbers = #tpu.dot_dimension_numbers<[1], [0], [0], [1], [0, 0, 1, 1], [], []>} : vector<8x32xbf16>, vector<32x24xbf16>, vector<8x24xf32> -> vector<8x24xf32>
    %c0_21 = arith.constant 0 : index
    %c0_22 = arith.constant 0 : index
    %46 = vector.load %arg6[%c0_21, %c0_22] : memref<1x24xf32, #tpu.memory_space<vmem>>, vector<1x24xf32>
    %47 = vector.broadcast %46 : vector<1x24xf32> to vector<8x24xf32>
    %48 = arith.addf %45, %47 : vector<8x24xf32>
    %49 = vector.extract_strided_slice %48 {offsets = [0, 0], sizes = [8, 8], strides = [1, 1]} : vector<8x24xf32> to vector<8x8xf32>
    %50 = vector.extract_strided_slice %48 {offsets = [0, 8], sizes = [8, 16], strides = [1, 1]} : vector<8x24xf32> to vector<8x16xf32>
    %51 = arith.subf %0, %49 : vector<8x8xf32>
    %c0_23 = arith.constant 0 : index
    %c0_24 = arith.constant 0 : index
    %52 = vector.load %arg7[%c0_23, %c0_24] : memref<8x8xf32, #tpu.memory_space<vmem>>, vector<8x8xf32>
    tpu.vector_store %arg7[%c0_23, %c0_24], %51 {strides = array<i32>} : memref<8x8xf32, #tpu.memory_space<vmem>>, vector<8x8xf32>,
    %c0_25 = arith.constant 0 : index
    %c0_26 = arith.constant 0 : index
    %53 = vector.load %arg8[%c0_25, %c0_26] : memref<8x16xf32, #tpu.memory_space<vmem>>, vector<8x16xf32>
    tpu.vector_store %arg8[%c0_25, %c0_26], %50 {strides = array<i32>} : memref<8x16xf32, #tpu.memory_space<vmem>>, vector<8x16xf32>,
    return
  }
  func.func @transform_0(%arg0: i32) -> (i32, i32) {
    %c0_i32 = arith.constant 0 : i32
    %c0_i32_0 = arith.constant 0 : i32
    return %arg0, %c0_i32 : i32, i32
  }
  func.func @transform_1(%arg0: i32) -> (i32, i32) {
    %c0_i32 = arith.constant 0 : i32
    %c0_i32_0 = arith.constant 0 : i32
    %c0_i32_1 = arith.constant 0 : i32
    return %c0_i32, %c0_i32_0 : i32, i32
  }
  func.func @transform_2(%arg0: i32) -> (i32, i32) {
    %c0_i32 = arith.constant 0 : i32
    %c0_i32_0 = arith.constant 0 : i32
    %c0_i32_1 = arith.constant 0 : i32
    return %c0_i32, %c0_i32_0 : i32, i32
  }
  func.func @transform_3(%arg0: i32) -> (i32, i32) {
    %c0_i32 = arith.constant 0 : i32
    %c0_i32_0 = arith.constant 0 : i32
    %c0_i32_1 = arith.constant 0 : i32
    return %c0_i32, %c0_i32_0 : i32, i32
  }
  func.func @transform_4(%arg0: i32) -> (i32, i32) {
    %c0_i32 = arith.constant 0 : i32
    %c0_i32_0 = arith.constant 0 : i32
    %c0_i32_1 = arith.constant 0 : i32
    return %c0_i32, %c0_i32_0 : i32, i32
  }
  func.func @transform_5(%arg0: i32) -> (i32, i32) {
    %c0_i32 = arith.constant 0 : i32
    %c0_i32_0 = arith.constant 0 : i32
    %c0_i32_1 = arith.constant 0 : i32
    return %c0_i32, %c0_i32_0 : i32, i32
  }
  func.func @transform_6(%arg0: i32) -> (i32, i32) {
    %c0_i32 = arith.constant 0 : i32
    %c0_i32_0 = arith.constant 0 : i32
    return %arg0, %c0_i32 : i32, i32
  }
  func.func @transform_7(%arg0: i32) -> (i32, i32) {
    %c0_i32 = arith.constant 0 : i32
    %c0_i32_0 = arith.constant 0 : i32
    return %arg0, %c0_i32 : i32, i32
  }
}

module attributes {stable_mosaic.version = 11 : i64} {
  func.func @head_kernel(%arg0: memref<8x32xf32, #tpu.memory_space<vmem>>, %arg1: memref<1x32xf32, #tpu.memory_space<vmem>>, %arg2: memref<1x32xf32, #tpu.memory_space<vmem>>, %arg3: memref<1x32xbf16, #tpu.memory_space<vmem>>, %arg4: memref<1x1xf32, #tpu.memory_space<vmem>>, %arg5: memref<1x8xf32, #tpu.memory_space<vmem>>) attributes {dimension_semantics = [], scalar_prefetch = 0 : i64, scratch_operands = 0 : i64, tpu.core_type = #tpu.core_type<tc>} {
    %c0 = arith.constant 0 : index
    %c0_0 = arith.constant 0 : index
    %0 = vector.load %arg0[%c0, %c0_0] : memref<8x32xf32, #tpu.memory_space<vmem>>, vector<8x32xf32>
    %cst = arith.constant dense<0.000000e+00> : vector<32xf32>
    %1 = vector.multi_reduction <add>, %0, %cst [0] : vector<8x32xf32> to vector<32xf32>
    %2 = vector.shape_cast %1 : vector<32xf32> to vector<1x32xf32>
    %cst_1 = arith.constant 8.000000e+00 : f32
    %3 = vector.broadcast %cst_1 : f32 to vector<1x32xf32>
    %4 = arith.divf %2, %3 : vector<1x32xf32>
    %5 = vector.broadcast %4 : vector<1x32xf32> to vector<8x32xf32>
    %6 = arith.subf %0, %5 : vector<8x32xf32>
    %7 = arith.mulf %6, %6 : vector<8x32xf32>
    %cst_2 = arith.constant dense<0.000000e+00> : vector<32xf32>
    %8 = vector.multi_reduction <add>, %7, %cst_2 [0] : vector<8x32xf32> to vector<32xf32>
    %9 = vector.shape_cast %8 : vector<32xf32> to vector<1x32xf32>
    %cst_3 = arith.constant 8.000000e+00 : f32
    %10 = vector.broadcast %cst_3 : f32 to vector<1x32xf32>
    %11 = arith.divf %9, %10 : vector<1x32xf32>
    %12 = vector.broadcast %4 : vector<1x32xf32> to vector<8x32xf32>
    %13 = arith.subf %0, %12 : vector<8x32xf32>
    %cst_4 = arith.constant 9.99999974E-6 : f32
    %14 = vector.broadcast %cst_4 : f32 to vector<1x32xf32>
    %15 = arith.addf %11, %14 : vector<1x32xf32>
    %16 = math.rsqrt %15 : vector<1x32xf32>
    %17 = vector.broadcast %16 : vector<1x32xf32> to vector<8x32xf32>
    %18 = arith.mulf %13, %17 : vector<8x32xf32>
    %c0_5 = arith.constant 0 : index
    %c0_6 = arith.constant 0 : index
    %19 = vector.load %arg1[%c0_5, %c0_6] : memref<1x32xf32, #tpu.memory_space<vmem>>, vector<1x32xf32>
    %20 = vector.broadcast %19 : vector<1x32xf32> to vector<8x32xf32>
    %21 = arith.mulf %18, %20 : vector<8x32xf32>
    %c0_7 = arith.constant 0 : index
    %c0_8 = arith.constant 0 : index
    %22 = vector.load %arg2[%c0_7, %c0_8] : memref<1x32xf32, #tpu.memory_space<vmem>>, vector<1x32xf32>
    %23 = vector.broadcast %22 : vector<1x32xf32> to vector<8x32xf32>
    %24 = arith.addf %21, %23 : vector<8x32xf32>
    %cst_9 = arith.constant 0.000000e+00 : f32
    %25 = vector.broadcast %cst_9 : f32 to vector<8x32xf32>
    %26 = arith.cmpf ogt, %24, %25 : vector<8x32xf32>
    %cst_10 = arith.constant 0.00999999977 : f32
    %27 = vector.broadcast %cst_10 : f32 to vector<8x32xf32>
    %28 = arith.mulf %27, %24 : vector<8x32xf32>
    %29 = arith.select %26, %24, %28 : vector<8x32xi1>, vector<8x32xf32>
    %c0_11 = arith.constant 0 : index
    %c0_12 = arith.constant 0 : index
    %30 = vector.load %arg3[%c0_11, %c0_12] : memref<1x32xbf16, #tpu.memory_space<vmem>>, vector<1x32xbf16>
    %31 = arith.truncf %29 : vector<8x32xf32> to vector<8x32xbf16>
    %cst_13 = arith.constant dense<0.000000e+00> : vector<1x8xf32>
    %32 = tpu.matmul %30, %31, %cst_13 {dimension_numbers = #tpu.dot_dimension_numbers<[1], [1], [0], [0], [0, 0, 1, 0], [], []>} : vector<1x32xbf16>, vector<8x32xbf16>, vector<1x8xf32> -> vector<1x8xf32>
    %c0_14 = arith.constant 0 : index
    %c0_15 = arith.constant 0 : index
    %33 = vector.load %arg4[%c0_14, %c0_15] : memref<1x1xf32, #tpu.memory_space<vmem>>, vector<1x1xf32>
    %34 = vector.broadcast %33 : vector<1x1xf32> to vector<1x8xf32>
    %35 = arith.addf %32, %34 : vector<1x8xf32>
    %c0_16 = arith.constant 0 : index
    %c0_17 = arith.constant 0 : index
    %36 = vector.load %arg5[%c0_16, %c0_17] : memref<1x8xf32, #tpu.memory_space<vmem>>, vector<1x8xf32>
    tpu.vector_store %arg5[%c0_16, %c0_17], %35 {strides = array<i32>} : memref<1x8xf32, #tpu.memory_space<vmem>>, vector<1x8xf32>,
    return
  }
}

module attributes {stable_mosaic.version = 11 : i64} {
  func.func @hidden_kernel(%arg0: i32, %arg1: memref<8x8xf32, #tpu.memory_space<vmem>>, %arg2: memref<8x16xf32, #tpu.memory_space<vmem>>, %arg3: memref<3x8xf32, #tpu.memory_space<vmem>>, %arg4: memref<2x8x8xf32, #tpu.memory_space<vmem>>, %arg5: memref<2x8x32xbf16, #tpu.memory_space<vmem>>, %arg6: memref<2x1x32xf32, #tpu.memory_space<vmem>>, %arg7: memref<32x16xbf16, #tpu.memory_space<vmem>>, %arg8: memref<1x16xf32, #tpu.memory_space<vmem>>, %arg9: memref<16x32xbf16, #tpu.memory_space<vmem>>, %arg10: memref<1x32xf32, #tpu.memory_space<vmem>>, %arg11: memref<8x32xf32, #tpu.memory_space<vmem>>) attributes {dimension_semantics = [#tpu.dimension_semantics<parallel>], iteration_bounds = array<i64: 1>, scalar_prefetch = 0 : i64, scratch_operands = 0 : i64, tpu.core_type = #tpu.core_type<tc>, window_params = [{transform_indices = @transform_0, window_bounds = array<i64: 8, 8>}, {transform_indices = @transform_1, window_bounds = array<i64: 8, 16>}, {pipeline_mode = #tpu.pipeline_mode<synchronous>, transform_indices = @transform_2, window_bounds = array<i64: 3, 8>}, {pipeline_mode = #tpu.pipeline_mode<synchronous>, transform_indices = @transform_3, window_bounds = array<i64: 2, 8, 8>}, {pipeline_mode = #tpu.pipeline_mode<synchronous>, transform_indices = @transform_4, window_bounds = array<i64: 2, 8, 32>}, {pipeline_mode = #tpu.pipeline_mode<synchronous>, transform_indices = @transform_5, window_bounds = array<i64: 2, 1, 32>}, {pipeline_mode = #tpu.pipeline_mode<synchronous>, transform_indices = @transform_6, window_bounds = array<i64: 32, 16>}, {pipeline_mode = #tpu.pipeline_mode<synchronous>, transform_indices = @transform_7, window_bounds = array<i64: 1, 16>}, {pipeline_mode = #tpu.pipeline_mode<synchronous>, transform_indices = @transform_8, window_bounds = array<i64: 16, 32>}, {pipeline_mode = #tpu.pipeline_mode<synchronous>, transform_indices = @transform_9, window_bounds = array<i64: 1, 32>}, {transform_indices = @transform_10, window_bounds = array<i64: 8, 32>}]} {
    %c0 = arith.constant 0 : index
    %c0_0 = arith.constant 0 : index
    %0 = vector.load %arg1[%c0, %c0_0] : memref<8x8xf32, #tpu.memory_space<vmem>>, vector<8x8xf32>
    %c0_1 = arith.constant 0 : index
    %c0_2 = arith.constant 0 : index
    %1 = vector.load %arg3[%c0_1, %c0_2] : memref<3x8xf32, #tpu.memory_space<vmem>>, vector<3x8xf32>
    %2 = arith.truncf %1 : vector<3x8xf32> to vector<3x8xbf16>
    %c0_3 = arith.constant 0 : index
    %c0_4 = arith.constant 0 : index
    %c0_5 = arith.constant 0 : index
    %3 = vector.load %arg4[%c0_3, %c0_4, %c0_5] : memref<2x8x8xf32, #tpu.memory_space<vmem>>, vector<1x8x8xf32>
    %4 = vector.shape_cast %3 : vector<1x8x8xf32> to vector<8x8xf32>
    %cst = arith.constant dense<0.000000e+00> : vector<8x8xf32>
    %5 = tpu.matmul %0, %4, %cst {dimension_numbers = #tpu.dot_dimension_numbers<[1], [0], [0], [1], [0, 0, 1, 1], [], []>} : vector<8x8xf32>, vector<8x8xf32>, vector<8x8xf32> -> vector<8x8xf32>
    %cst_6 = arith.constant dense<0.000000e+00> : vector<3x8xf32>
    %6 = tpu.matmul %1, %4, %cst_6 {dimension_numbers = #tpu.dot_dimension_numbers<[1], [0], [0], [1], [0, 0, 1, 1], [], []>} : vector<3x8xf32>, vector<8x8xf32>, vector<3x8xf32> -> vector<3x8xf32>
    %cst_7 = arith.constant dense<0.000000e+00> : vector<8x3xf32>
    %7 = tpu.matmul %5, %6, %cst_7 {dimension_numbers = #tpu.dot_dimension_numbers<[1], [1], [0], [0], [0, 0, 1, 0], [], []>} : vector<8x8xf32>, vector<3x8xf32>, vector<8x3xf32> -> vector<8x3xf32>
    %cst_8 = arith.constant dense<0xFF800000> : vector<8xf32>
    %8 = vector.multi_reduction <maximumf>, %7, %cst_8 [1] : vector<8x3xf32> to vector<8xf32>
    %9 = vector.shape_cast %8 : vector<8xf32> to vector<8x1xf32>
    %10 = vector.broadcast %9 : vector<8x1xf32> to vector<8x3xf32>
    %11 = arith.cmpf oge, %7, %10 : vector<8x3xf32>
    %cst_9 = arith.constant 0xFF800000 : f32
    %12 = vector.broadcast %cst_9 : f32 to vector<8x3xf32>
    %13 = arith.select %11, %12, %7 : vector<8x3xi1>, vector<8x3xf32>
    %cst_10 = arith.constant dense<0xFF800000> : vector<8xf32>
    %14 = vector.multi_reduction <maximumf>, %13, %cst_10 [1] : vector<8x3xf32> to vector<8xf32>
    %15 = vector.shape_cast %14 : vector<8xf32> to vector<8x1xf32>
    %16 = vector.broadcast %15 : vector<8x1xf32> to vector<8x3xf32>
    %17 = arith.cmpf oge, %13, %16 : vector<8x3xf32>
    %cst_11 = arith.constant 0xFF800000 : f32
    %18 = vector.broadcast %cst_11 : f32 to vector<8x3xf32>
    %19 = arith.select %17, %18, %13 : vector<8x3xi1>, vector<8x3xf32>
    %cst_12 = arith.constant dense<0xFF800000> : vector<8xf32>
    %20 = vector.multi_reduction <maximumf>, %19, %cst_12 [1] : vector<8x3xf32> to vector<8xf32>
    %21 = vector.shape_cast %20 : vector<8xf32> to vector<8x1xf32>
    %22 = vector.broadcast %21 : vector<8x1xf32> to vector<8x3xf32>
    %23 = arith.cmpf oge, %7, %22 : vector<8x3xf32>
    %24 = vector.broadcast %9 : vector<8x1xf32> to vector<8x3xf32>
    %25 = arith.subf %7, %24 : vector<8x3xf32>
    %26 = math.exp %25 : vector<8x3xf32>
    %cst_13 = arith.constant 0.000000e+00 : f32
    %27 = vector.broadcast %cst_13 : f32 to vector<8x3xf32>
    %28 = arith.select %23, %26, %27 : vector<8x3xi1>, vector<8x3xf32>
    %cst_14 = arith.constant dense<0.000000e+00> : vector<8xf32>
    %29 = vector.multi_reduction <add>, %28, %cst_14 [1] : vector<8x3xf32> to vector<8xf32>
    %30 = vector.shape_cast %29 : vector<8xf32> to vector<8x1xf32>
    %31 = vector.broadcast %30 : vector<8x1xf32> to vector<8x3xf32>
    %32 = arith.divf %28, %31 : vector<8x3xf32>
    %33 = arith.truncf %32 : vector<8x3xf32> to vector<8x3xbf16>
    %cst_15 = arith.constant dense<0.000000e+00> : vector<8x8xf32>
    %34 = tpu.matmul %33, %2, %cst_15 {dimension_numbers = #tpu.dot_dimension_numbers<[1], [0], [0], [1], [0, 0, 1, 1], [], []>} : vector<8x3xbf16>, vector<3x8xbf16>, vector<8x8xf32> -> vector<8x8xf32>
    %35 = arith.truncf %34 : vector<8x8xf32> to vector<8x8xbf16>
    %c0_16 = arith.constant 0 : index
    %c0_17 = arith.constant 0 : index
    %c0_18 = arith.constant 0 : index
    %36 = vector.load %arg5[%c0_16, %c0_17, %c0_18] : memref<2x8x32xbf16, #tpu.memory_space<vmem>>, vector<1x8x32xbf16>
    %37 = vector.shape_cast %36 : vector<1x8x32xbf16> to vector<8x32xbf16>
    %cst_19 = arith.constant dense<0.000000e+00> : vector<8x32xf32>
    %38 = tpu.matmul %35, %37, %cst_19 {dimension_numbers = #tpu.dot_dimension_numbers<[1], [0], [0], [1], [0, 0, 1, 1], [], []>} : vector<8x8xbf16>, vector<8x32xbf16>, vector<8x32xf32> -> vector<8x32xf32>
    %c0_20 = arith.constant 0 : index
    %c0_21 = arith.constant 0 : index
    %c0_22 = arith.constant 0 : index
    %39 = vector.load %arg6[%c0_20, %c0_21, %c0_22] : memref<2x1x32xf32, #tpu.memory_space<vmem>>, vector<1x1x32xf32>
    %40 = vector.shape_cast %39 : vector<1x1x32xf32> to vector<1x32xf32>
    %41 = vector.broadcast %40 : vector<1x32xf32> to vector<8x32xf32>
    %42 = arith.addf %38, %41 : vector<8x32xf32>
    %cst_23 = arith.constant 0.000000e+00 : f32
    %43 = vector.broadcast %cst_23 : f32 to vector<8x32xf32>
    %44 = arith.cmpf ogt, %42, %43 : vector<8x32xf32>
    %cst_24 = arith.constant 0.00999999977 : f32
    %45 = vector.broadcast %cst_24 : f32 to vector<8x32xf32>
    %46 = arith.mulf %45, %42 : vector<8x32xf32>
    %47 = arith.select %44, %42, %46 : vector<8x32xi1>, vector<8x32xf32>
    %c1 = arith.constant 1 : index
    %c0_25 = arith.constant 0 : index
    %c0_26 = arith.constant 0 : index
    %48 = vector.load %arg4[%c1, %c0_25, %c0_26] : memref<2x8x8xf32, #tpu.memory_space<vmem>>, vector<1x8x8xf32>
    %49 = vector.shape_cast %48 : vector<1x8x8xf32> to vector<8x8xf32>
    %cst_27 = arith.constant dense<0.000000e+00> : vector<8x8xf32>
    %50 = tpu.matmul %0, %49, %cst_27 {dimension_numbers = #tpu.dot_dimension_numbers<[1], [0], [0], [1], [0, 0, 1, 1], [], []>} : vector<8x8xf32>, vector<8x8xf32>, vector<8x8xf32> -> vector<8x8xf32>
    %cst_28 = arith.constant dense<0.000000e+00> : vector<3x8xf32>
    %51 = tpu.matmul %1, %49, %cst_28 {dimension_numbers = #tpu.dot_dimension_numbers<[1], [0], [0], [1], [0, 0, 1, 1], [], []>} : vector<3x8xf32>, vector<8x8xf32>, vector<3x8xf32> -> vector<3x8xf32>
    %cst_29 = arith.constant dense<0.000000e+00> : vector<8x3xf32>
    %52 = tpu.matmul %50, %51, %cst_29 {dimension_numbers = #tpu.dot_dimension_numbers<[1], [1], [0], [0], [0, 0, 1, 0], [], []>} : vector<8x8xf32>, vector<3x8xf32>, vector<8x3xf32> -> vector<8x3xf32>
    %cst_30 = arith.constant dense<0xFF800000> : vector<8xf32>
    %53 = vector.multi_reduction <maximumf>, %52, %cst_30 [1] : vector<8x3xf32> to vector<8xf32>
    %54 = vector.shape_cast %53 : vector<8xf32> to vector<8x1xf32>
    %55 = vector.broadcast %54 : vector<8x1xf32> to vector<8x3xf32>
    %56 = arith.cmpf oge, %52, %55 : vector<8x3xf32>
    %cst_31 = arith.constant 0xFF800000 : f32
    %57 = vector.broadcast %cst_31 : f32 to vector<8x3xf32>
    %58 = arith.select %56, %57, %52 : vector<8x3xi1>, vector<8x3xf32>
    %cst_32 = arith.constant dense<0xFF800000> : vector<8xf32>
    %59 = vector.multi_reduction <maximumf>, %58, %cst_32 [1] : vector<8x3xf32> to vector<8xf32>
    %60 = vector.shape_cast %59 : vector<8xf32> to vector<8x1xf32>
    %61 = vector.broadcast %60 : vector<8x1xf32> to vector<8x3xf32>
    %62 = arith.cmpf oge, %58, %61 : vector<8x3xf32>
    %cst_33 = arith.constant 0xFF800000 : f32
    %63 = vector.broadcast %cst_33 : f32 to vector<8x3xf32>
    %64 = arith.select %62, %63, %58 : vector<8x3xi1>, vector<8x3xf32>
    %cst_34 = arith.constant dense<0xFF800000> : vector<8xf32>
    %65 = vector.multi_reduction <maximumf>, %64, %cst_34 [1] : vector<8x3xf32> to vector<8xf32>
    %66 = vector.shape_cast %65 : vector<8xf32> to vector<8x1xf32>
    %67 = vector.broadcast %66 : vector<8x1xf32> to vector<8x3xf32>
    %68 = arith.cmpf oge, %52, %67 : vector<8x3xf32>
    %69 = vector.broadcast %54 : vector<8x1xf32> to vector<8x3xf32>
    %70 = arith.subf %52, %69 : vector<8x3xf32>
    %71 = math.exp %70 : vector<8x3xf32>
    %cst_35 = arith.constant 0.000000e+00 : f32
    %72 = vector.broadcast %cst_35 : f32 to vector<8x3xf32>
    %73 = arith.select %68, %71, %72 : vector<8x3xi1>, vector<8x3xf32>
    %cst_36 = arith.constant dense<0.000000e+00> : vector<8xf32>
    %74 = vector.multi_reduction <add>, %73, %cst_36 [1] : vector<8x3xf32> to vector<8xf32>
    %75 = vector.shape_cast %74 : vector<8xf32> to vector<8x1xf32>
    %76 = vector.broadcast %75 : vector<8x1xf32> to vector<8x3xf32>
    %77 = arith.divf %73, %76 : vector<8x3xf32>
    %78 = arith.truncf %77 : vector<8x3xf32> to vector<8x3xbf16>
    %cst_37 = arith.constant dense<0.000000e+00> : vector<8x8xf32>
    %79 = tpu.matmul %78, %2, %cst_37 {dimension_numbers = #tpu.dot_dimension_numbers<[1], [0], [0], [1], [0, 0, 1, 1], [], []>} : vector<8x3xbf16>, vector<3x8xbf16>, vector<8x8xf32> -> vector<8x8xf32>
    %80 = arith.truncf %79 : vector<8x8xf32> to vector<8x8xbf16>
    %c1_38 = arith.constant 1 : index
    %c0_39 = arith.constant 0 : index
    %c0_40 = arith.constant 0 : index
    %81 = vector.load %arg5[%c1_38, %c0_39, %c0_40] : memref<2x8x32xbf16, #tpu.memory_space<vmem>>, vector<1x8x32xbf16>
    %82 = vector.shape_cast %81 : vector<1x8x32xbf16> to vector<8x32xbf16>
    %cst_41 = arith.constant dense<0.000000e+00> : vector<8x32xf32>
    %83 = tpu.matmul %80, %82, %cst_41 {dimension_numbers = #tpu.dot_dimension_numbers<[1], [0], [0], [1], [0, 0, 1, 1], [], []>} : vector<8x8xbf16>, vector<8x32xbf16>, vector<8x32xf32> -> vector<8x32xf32>
    %c1_42 = arith.constant 1 : index
    %c0_43 = arith.constant 0 : index
    %c0_44 = arith.constant 0 : index
    %84 = vector.load %arg6[%c1_42, %c0_43, %c0_44] : memref<2x1x32xf32, #tpu.memory_space<vmem>>, vector<1x1x32xf32>
    %85 = vector.shape_cast %84 : vector<1x1x32xf32> to vector<1x32xf32>
    %86 = vector.broadcast %85 : vector<1x32xf32> to vector<8x32xf32>
    %87 = arith.addf %83, %86 : vector<8x32xf32>
    %cst_45 = arith.constant 0.000000e+00 : f32
    %88 = vector.broadcast %cst_45 : f32 to vector<8x32xf32>
    %89 = arith.cmpf ogt, %87, %88 : vector<8x32xf32>
    %cst_46 = arith.constant 0.00999999977 : f32
    %90 = vector.broadcast %cst_46 : f32 to vector<8x32xf32>
    %91 = arith.mulf %90, %87 : vector<8x32xf32>
    %92 = arith.select %89, %87, %91 : vector<8x32xi1>, vector<8x32xf32>
    %93 = arith.addf %47, %92 : vector<8x32xf32>
    %94 = arith.truncf %93 : vector<8x32xf32> to vector<8x32xbf16>
    %c0_47 = arith.constant 0 : index
    %c0_48 = arith.constant 0 : index
    %95 = vector.load %arg7[%c0_47, %c0_48] : memref<32x16xbf16, #tpu.memory_space<vmem>>, vector<32x16xbf16>
    %cst_49 = arith.constant dense<0.000000e+00> : vector<8x16xf32>
    %96 = tpu.matmul %94, %95, %cst_49 {dimension_numbers = #tpu.dot_dimension_numbers<[1], [0], [0], [1], [0, 0, 1, 1], [], []>} : vector<8x32xbf16>, vector<32x16xbf16>, vector<8x16xf32> -> vector<8x16xf32>
    %c0_50 = arith.constant 0 : index
    %c0_51 = arith.constant 0 : index
    %97 = vector.load %arg8[%c0_50, %c0_51] : memref<1x16xf32, #tpu.memory_space<vmem>>, vector<1x16xf32>
    %98 = vector.broadcast %97 : vector<1x16xf32> to vector<8x16xf32>
    %99 = arith.addf %96, %98 : vector<8x16xf32>
    %c0_52 = arith.constant 0 : index
    %c0_53 = arith.constant 0 : index
    %100 = vector.load %arg2[%c0_52, %c0_53] : memref<8x16xf32, #tpu.memory_space<vmem>>, vector<8x16xf32>
    %101 = arith.addf %99, %100 : vector<8x16xf32>
    %102 = arith.truncf %101 : vector<8x16xf32> to vector<8x16xbf16>
    %c0_54 = arith.constant 0 : index
    %c0_55 = arith.constant 0 : index
    %103 = vector.load %arg9[%c0_54, %c0_55] : memref<16x32xbf16, #tpu.memory_space<vmem>>, vector<16x32xbf16>
    %cst_56 = arith.constant dense<0.000000e+00> : vector<8x32xf32>
    %104 = tpu.matmul %102, %103, %cst_56 {dimension_numbers = #tpu.dot_dimension_numbers<[1], [0], [0], [1], [0, 0, 1, 1], [], []>} : vector<8x16xbf16>, vector<16x32xbf16>, vector<8x32xf32> -> vector<8x32xf32>
    %c0_57 = arith.constant 0 : index
    %c0_58 = arith.constant 0 : index
    %105 = vector.load %arg10[%c0_57, %c0_58] : memref<1x32xf32, #tpu.memory_space<vmem>>, vector<1x32xf32>
    %106 = vector.broadcast %105 : vector<1x32xf32> to vector<8x32xf32>
    %107 = arith.addf %104, %106 : vector<8x32xf32>
    %c0_59 = arith.constant 0 : index
    %c0_60 = arith.constant 0 : index
    %108 = vector.load %arg11[%c0_59, %c0_60] : memref<8x32xf32, #tpu.memory_space<vmem>>, vector<8x32xf32>
    tpu.vector_store %arg11[%c0_59, %c0_60], %107 {strides = array<i32>} : memref<8x32xf32, #tpu.memory_space<vmem>>, vector<8x32xf32>,
    return
  }
  func.func @transform_0(%arg0: i32) -> (i32, i32) {
    %c0_i32 = arith.constant 0 : i32
    %c0_i32_0 = arith.constant 0 : i32
    return %arg0, %c0_i32 : i32, i32
  }
  func.func @transform_1(%arg0: i32) -> (i32, i32) {
    %c0_i32 = arith.constant 0 : i32
    %c0_i32_0 = arith.constant 0 : i32
    return %arg0, %c0_i32 : i32, i32
  }
  func.func @transform_2(%arg0: i32) -> (i32, i32) {
    %c0_i32 = arith.constant 0 : i32
    %c0_i32_0 = arith.constant 0 : i32
    %c0_i32_1 = arith.constant 0 : i32
    return %c0_i32, %c0_i32_0 : i32, i32
  }
  func.func @transform_3(%arg0: i32) -> (i32, i32, i32) {
    %c0_i32 = arith.constant 0 : i32
    %c0_i32_0 = arith.constant 0 : i32
    %c0_i32_1 = arith.constant 0 : i32
    %c0_i32_2 = arith.constant 0 : i32
    return %c0_i32, %c0_i32_0, %c0_i32_1 : i32, i32, i32
  }
  func.func @transform_4(%arg0: i32) -> (i32, i32, i32) {
    %c0_i32 = arith.constant 0 : i32
    %c0_i32_0 = arith.constant 0 : i32
    %c0_i32_1 = arith.constant 0 : i32
    %c0_i32_2 = arith.constant 0 : i32
    return %c0_i32, %c0_i32_0, %c0_i32_1 : i32, i32, i32
  }
  func.func @transform_5(%arg0: i32) -> (i32, i32, i32) {
    %c0_i32 = arith.constant 0 : i32
    %c0_i32_0 = arith.constant 0 : i32
    %c0_i32_1 = arith.constant 0 : i32
    %c0_i32_2 = arith.constant 0 : i32
    return %c0_i32, %c0_i32_0, %c0_i32_1 : i32, i32, i32
  }
  func.func @transform_6(%arg0: i32) -> (i32, i32) {
    %c0_i32 = arith.constant 0 : i32
    %c0_i32_0 = arith.constant 0 : i32
    %c0_i32_1 = arith.constant 0 : i32
    return %c0_i32, %c0_i32_0 : i32, i32
  }
  func.func @transform_7(%arg0: i32) -> (i32, i32) {
    %c0_i32 = arith.constant 0 : i32
    %c0_i32_0 = arith.constant 0 : i32
    %c0_i32_1 = arith.constant 0 : i32
    return %c0_i32, %c0_i32_0 : i32, i32
  }
  func.func @transform_8(%arg0: i32) -> (i32, i32) {
    %c0_i32 = arith.constant 0 : i32
    %c0_i32_0 = arith.constant 0 : i32
    %c0_i32_1 = arith.constant 0 : i32
    return %c0_i32, %c0_i32_0 : i32, i32
  }
  func.func @transform_9(%arg0: i32) -> (i32, i32) {
    %c0_i32 = arith.constant 0 : i32
    %c0_i32_0 = arith.constant 0 : i32
    %c0_i32_1 = arith.constant 0 : i32
    return %c0_i32, %c0_i32_0 : i32, i32
  }
  func.func @transform_10(%arg0: i32) -> (i32, i32) {
    %c0_i32 = arith.constant 0 : i32
    %c0_i32_0 = arith.constant 0 : i32
    return %arg0, %c0_i32 : i32, i32
  }
}

</mosaic_0001>

<llo_original>
// kernel: ics_forward.3
$region0: #{ics_forward.3}
  #allocation0 [shape = 'u32[]', space=smem, size = 0x4, offset = 0x4, fixed_abs, tag = 'smem constant byte address 0x4 - core index']
  #allocation1 [shape = 'u32[144,128]{1,0:T(1,128)}', space=vmem, size = 0x12000, scoped, tag = 'internal scratch']
  %s0 = inlined_call_operand.vmem [shape: f32[8,8], index: 0, kind: input, shape index: {}, may-alias: {0,1}]
  %s1 = inlined_call_operand.vmem [shape: f32[8,8], index: 1, kind: input, shape index: {}, may-alias: {0,1}]
  %s2 = inlined_call_operand.vmem [shape: bf16[8,32], index: 2, kind: input, shape index: {}]
  %s3 = inlined_call_operand.vmem [shape: f32[1,32], index: 3, kind: input, shape index: {}]
  %s4 = inlined_call_operand.vmem [shape: bf16[32,24], index: 4, kind: input, shape index: {}]
  %s5 = inlined_call_operand.vmem [shape: f32[1,24], index: 5, kind: input, shape index: {}]
  %s6 = inlined_call_operand.vmem [shape: f32[8,8], index: 6, kind: output, shape index: {0}]
  %s7 = inlined_call_operand.vmem [shape: f32[8,16], index: 7, kind: output, shape index: {1}]
  %8 = xla_tuple %s6, %s7
  %s9 = sld [smem:[#allocation0]]
  $region42: #{ics_forward.3} parent=0
    _
  %s11 = ssub.s32 1, %s9
  %s12 = scalar_select 0, %s11, %s9
  // Predicated region
  $region2: #{ics_forward.3} parent=0 // pred_check
    _
  $region3: #{ics_forward.3} parent=0 // pred_check_branch
    %14 = sbr.rel (0) target = $region5
  $region4: #{ics_forward.3} parent=0 // pred_region
    _
  $region5: #{ics_forward.3} parent=0 // pred_fallthru
    _
  // Predicated region
  $region6: #{ics_forward.3} parent=0 // pred_check
    _
  $region7: #{ics_forward.3} parent=0 // pred_check_branch
    %16 = sbr.rel (0) target = $region9
  $region8: #{ics_forward.3} parent=0 // pred_region
    _
  $region9: #{ics_forward.3} parent=0 // pred_fallthru
    _
  // Predicated region
  $region10: #{ics_forward.3} parent=0 // pred_check
    _
  $region11: #{ics_forward.3} parent=0 // pred_check_branch
    %18 = sbr.rel (0) target = $region13
  $region12: #{ics_forward.3} parent=0 // pred_region
    _
  $region13: #{ics_forward.3} parent=0 // pred_fallthru
    _
  // Predicated region
  $region14: #{ics_forward.3} parent=0 // pred_check
    _
  $region15: #{ics_forward.3} parent=0 // pred_check_branch
    %20 = sbr.rel (0) target = $region17
  $region16: #{ics_forward.3} parent=0 // pred_region
    _
  $region17: #{ics_forward.3} parent=0 // pred_fallthru
    _
  // Predicated region
  $region18: #{ics_forward.3} parent=0 // pred_check
    _
  $region19: #{ics_forward.3} parent=0 // pred_check_branch
    %22 = sbr.rel (0) target = $region21
  $region20: #{ics_forward.3} parent=0 // pred_region
    _
  $region21: #{ics_forward.3} parent=0 // pred_fallthru
    _
  // Predicated region
  $region22: #{ics_forward.3} parent=0 // pred_check
    _
  $region23: #{ics_forward.3} parent=0 // pred_check_branch
    %24 = sbr.rel (0) target = $region25
  $region24: #{ics_forward.3} parent=0 // pred_region
    _
  $region25: #{ics_forward.3} parent=0 // pred_fallthru
    _
  %v26 = vld [vmem:[%s0] sm:$0xff]
  %v27 = vld [vmem:[%s1] sm:$0xff]
  %vm28 = vcmask 64512
  %v30 = vsel %vm28, %v26, 0
  %v33 = vsel %vm28, %v27, 0
  %35 = vmatprep.subr.mxu0 0.0
  %36 = vmatpush1.xpose.msra.mxu0 0.0
  %37 = vmatprep.subr.mxu0 0.0
  %38 = vmatpush1.xpose.msra.mxu0 0.0
  %39 = vmatprep.subr.mxu0 0.0
  %40 = vmatpush1.xpose.msra.mxu0 0.0
  %41 = vmatprep.subr.mxu0 0.0
  %42 = vmatpush1.xpose.msra.mxu0 0.0
  %43 = vmatprep.subr.mxu0 0.0
  %44 = vmatpush1.xpose.msra.mxu0 0.0
  %45 = vmatprep.subr.mxu0 0.0
  %46 = vmatpush1.xpose.msra.mxu0 0.0
  %47 = vmatprep.subr.mxu0 0.0
  %48 = vmatpush1.xpose.msra.mxu0 0.0
  %49 = vmatprep.subr.mxu0 0.0
  %50 = vmatpush1.xpose.msra.mxu0 0.0
  %51 = vmatprep.subr.mxu0 0.0
  %52 = vmatpush1.xpose.msra.mxu0 0.0
  %53 = vmatprep.subr.mxu0 0.0
  %54 = vmatpush1.xpose.msra.mxu0 0.0
  %55 = vmatprep.subr.mxu0 0.0
  %56 = vmatpush1.xpose.msra.mxu0 0.0
  %57 = vmatprep.subr.mxu0 0.0
  %58 = vmatpush1.xpose.msra.mxu0 0.0
  %59 = vmatprep.subr.mxu0 0.0
  %60 = vmatpush1.xpose.msra.mxu0 0.0
  %61 = vmatprep.subr.mxu0 0.0
  %62 = vmatpush1.xpose.msra.mxu0 0.0
  %63 = vmatprep.subr.mxu0 0.0
  %64 = vmatpush1.xpose.msra.mxu0 0.0
  %65 = vmatprep.subr.mxu0 0.0
  %66 = vmatpush1.xpose.msra.mxu0 %v33
  %67 = vmatprep.subr.mxu0 0.0
  %68 = vmatpush2.xpose.msra.mxu0 0.0
  %69 = vmatprep.subr.mxu0 0.0
  %70 = vmatpush2.xpose.msra.mxu0 0.0
  %71 = vmatprep.subr.mxu0 0.0
  %72 = vmatpush2.xpose.msra.mxu0 0.0
  %73 = vmatprep.subr.mxu0 0.0
  %74 = vmatpush2.xpose.msra.mxu0 0.0
  %75 = vmatprep.subr.mxu0 0.0
  %76 = vmatpush2.xpose.msra.mxu0 0.0
  %77 = vmatprep.subr.mxu0 0.0
  %78 = vmatpush2.xpose.msra.mxu0 0.0
  %79 = vmatprep.subr.mxu0 0.0
  %80 = vmatpush2.xpose.msra.mxu0 0.0
  %81 = vmatprep.subr.mxu0 0.0
  %82 = vmatpush2.xpose.msra.mxu0 0.0
  %83 = vmatprep.subr.mxu0 0.0
  %84 = vmatpush2.xpose.msra.mxu0 0.0
  %85 = vmatprep.subr.mxu0 0.0
  %86 = vmatpush2.xpose.msra.mxu0 0.0
  %87 = vmatprep.subr.mxu0 0.0
  %88 = vmatpush2.xpose.msra.mxu0 0.0
  %89 = vmatprep.subr.mxu0 0.0
  %90 = vmatpush2.xpose.msra.mxu0 0.0
  %91 = vmatprep.subr.mxu0 0.0
  %92 = vmatpush2.xpose.msra.mxu0 0.0
  %93 = vmatprep.subr.mxu0 0.0
  %94 = vmatpush2.xpose.msra.mxu0 0.0
  %95 = vmatprep.subr.mxu0 0.0
  %96 = vmatpush2.xpose.msra.mxu0 0.0
  %97 = vmatprep.subr.mxu0 0.0
  %98 = vmatpush2.xpose.msra.mxu0 0.0
  %99 = vmatprep.mubr.f32.mxu0 0.0
  %100 = vmatmul.mubr.f32.gmra.mxu0 %v30
  %v101 = vpop.f32.mrf.mxu0
  %v102 = vadd.f32 0.0, %v101
  %v103 = vpop.f32.mrf.mxu0
  %104 = vdwg.mxu0
  %v105 = vsel %vm28, %v102, -inf
  %106 = vmax.xlane.f32.xlu0 %v105
  %v107 = vpop.xlane.xlu0 %106
  %vm108 = vcmp.ge.f32.partialorder %v102, %v107
  %v109 = vsel %vm108, -inf, %v102
  %v110 = vsel %vm28, %v109, -inf
  %111 = vmax.xlane.f32.xlu0 %v110
  %v112 = vpop.xlane.xlu0 %111
  %vm113 = vcmp.ge.f32.partialorder %v109, %v112
  %v114 = vsel %vm113, -inf, %v109
  %v115 = vsel %vm28, %v114, -inf
  %116 = vmax.xlane.f32.xlu0 %v115
  %v117 = vpop.xlane.xlu0 %116
  %vm118 = vcmp.ge.f32.partialorder %v102, %v117
  %v119 = vsub.f32 %v102, %v107
  %v120 = vmul.f32 %v119, 1.442695
  %v121 = vpow.pop %v120
  %v122 = vsel %vm118, %v121, 0.0
  %v123 = vsel %vm28, %v122, 0.0
  %124 = vadd.xlane.f32.xlu0 %v123
  %v125 = vpop.xlane.xlu0 %124
  %v126 = vrcp.pop %v125
  %v127 = vmul.f32 %v122, %v126
  %v128 = vpack.c.bf16 %v127, %v127
  %v129 = vpack.c.bf16 %v27, %v27
  %v131 = vsel %vm28, %v128, 0
  %vm133 = vcmask 1043456
  %v135 = vsel %vm133, %v129, 0
  %137 = vmatprep.subr.bf16.mxu0 0
  %138 = vmatpush1.bf16.msra.mxu0 0
  %139 = vmatprep.subr.bf16.mxu0 0
  %140 = vmatpush1.bf16.msra.mxu0 0
  %141 = vmatprep.subr.bf16.mxu0 0
  %142 = vmatpush1.bf16.msra.mxu0 0
  %143 = vmatprep.subr.bf16.mxu0 0
  %144 = vmatpush1.bf16.msra.mxu0 0
  %145 = vmatprep.subr.bf16.mxu0 0
  %146 = vmatpush1.bf16.msra.mxu0 0
  %147 = vmatprep.subr.bf16.mxu0 0
  %148 = vmatpush1.bf16.msra.mxu0 0
  %149 = vmatprep.subr.bf16.mxu0 0
  %150 = vmatpush1.bf16.msra.mxu0 0
  %151 = vmatprep.subr.bf16.mxu0 0
  %152 = vmatpush1.bf16.msra.mxu0 %v135
  %153 = vmatprep.subr.bf16.mxu0 0
  %154 = vmatpush2.bf16.msra.mxu0 0
  %155 = vmatprep.subr.bf16.mxu0 0
  %156 = vmatpush2.bf16.msra.mxu0 0
  %157 = vmatprep.subr.bf16.mxu0 0
  %158 = vmatpush2.bf16.msra.mxu0 0
  %159 = vmatprep.subr.bf16.mxu0 0
  %160 = vmatpush2.bf16.msra.mxu0 0
  %161 = vmatprep.subr.bf16.mxu0 0
  %162 = vmatpush2.bf16.msra.mxu0 0
  %163 = vmatprep.subr.bf16.mxu0 0
  %164 = vmatpush2.bf16.msra.mxu0 0
  %165 = vmatprep.subr.bf16.mxu0 0
  %166 = vmatpush2.bf16.msra.mxu0 0
  %167 = vmatprep.subr.bf16.mxu0 0
  %168 = vmatpush2.bf16.msra.mxu0 0
  %169 = vmatprep.mubr.bf16.mxu0 0
  %170 = vmatmul.mubr.bf16.gmra.mxu0 %v131
  %v171 = vpop.f32.mrf.mxu0
  %v172 = vadd.f32 0.0, %v171
  %v173 = vpop.f32.mrf.mxu0
  %v174 = vpop.f32.mrf.mxu0
  %v175 = vpop.f32.mrf.mxu0
  %176 = vdwg.mxu0
  %v177 = vadd.f32 %v26, %v172
  %v178 = vpack.c.bf16 %v177, %v177
  %v179 = vld [vmem:[%s2] sm:$0xf]
  %v180 = vld [vmem:[%s3] sm:$0x1]
  %v182 = vlaneseq
  %v183 = vshrl.u32 %v182, 7
  %v184 = vsub.s32 0, %v183
  %v185 = vrot.slane %v180, %v184
  %v188 = vsel %vm28, %v178, 0
  %v191 = vsel %vm133, %v179, 0
  %193 = vmatprep.subr.bf16.mxu0 0
  %194 = vmatpush1.bf16.msra.mxu0 0
  %195 = vmatprep.subr.bf16.mxu0 0
  %196 = vmatpush1.bf16.msra.mxu0 0
  %197 = vmatprep.subr.bf16.mxu0 0
  %198 = vmatpush1.bf16.msra.mxu0 0
  %199 = vmatprep.subr.bf16.mxu0 0
  %200 = vmatpush1.bf16.msra.mxu0 0
  %201 = vmatprep.subr.bf16.mxu0 0
  %202 = vmatpush1.bf16.msra.mxu0 0
  %203 = vmatprep.subr.bf16.mxu0 0
  %204 = vmatpush1.bf16.msra.mxu0 0
  %205 = vmatprep.subr.bf16.mxu0 0
  %206 = vmatpush1.bf16.msra.mxu0 0
  %207 = vmatprep.subr.bf16.mxu0 0
  %208 = vmatpush1.bf16.msra.mxu0 %v191
  %209 = vmatprep.subr.bf16.mxu0 0
  %210 = vmatpush2.bf16.msra.mxu0 0
  %211 = vmatprep.subr.bf16.mxu0 0
  %212 = vmatpush2.bf16.msra.mxu0 0
  %213 = vmatprep.subr.bf16.mxu0 0
  %214 = vmatpush2.bf16.msra.mxu0 0
  %215 = vmatprep.subr.bf16.mxu0 0
  %216 = vmatpush2.bf16.msra.mxu0 0
  %217 = vmatprep.subr.bf16.mxu0 0
  %218 = vmatpush2.bf16.msra.mxu0 0
  %219 = vmatprep.subr.bf16.mxu0 0
  %220 = vmatpush2.bf16.msra.mxu0 0
  %221 = vmatprep.subr.bf16.mxu0 0
  %222 = vmatpush2.bf16.msra.mxu0 0
  %223 = vmatprep.subr.bf16.mxu0 0
  %224 = vmatpush2.bf16.msra.mxu0 0
  %225 = vmatprep.mubr.bf16.mxu0 0
  %226 = vmatmul.mubr.bf16.gmra.mxu0 %v188
  %v227 = vpop.f32.mrf.mxu0
  %v228 = vadd.f32 %v185, %v227
  %v229 = vpop.f32.mrf.mxu0
  %v230 = vpop.f32.mrf.mxu0
  %v231 = vpop.f32.mrf.mxu0
  %232 = vdwg.mxu0
  %vm233 = vcmp.gt.f32.partialorder %v228, 0.0
  %v234 = vmul.f32 %v228, 0.01
  %v235 = vsel %vm233, %v228, %v234
  %v236 = vpack.c.bf16 %v235, %v235
  %v237 = vld [vmem:[%s4] sm:$0xf]
  %v238 = vld [vmem:[%s4 + $0x4] sm:$0xf]
  %v239 = vld [vmem:[%s4 + $0x8] sm:$0xf]
  %v240 = vld [vmem:[%s4 + $0xc] sm:$0xf]
  %v241 = vld [vmem:[%s5] sm:$0x1]
  %v243 = vlaneseq
  %v244 = vshrl.u32 %v243, 7
  %v245 = vsub.s32 0, %v244
  %v246 = vrot.slane %v241, %v245
  %v252 = vunpack.c.l.b16 %v237
  %v253 = vunpack.c.l.b16 %v238
  %v254 = vunpack.c.l.b16 %v239
  %v255 = vunpack.c.l.b16 %v240
  %v256 = vpack.c.b16 %v253, %v252
  %v257 = vpack.c.b16 %v255, %v254
  %vm260 = vcmask 261120
  %v262 = vsel %vm260, %v236, 0
  %264 = vmatprep.subr.bf16.mxu0 0
  %265 = vmatpush1.bf16.msra.mxu0 0
  %266 = vmatprep.subr.bf16.mxu0 0
  %267 = vmatpush1.bf16.msra.mxu0 0
  %268 = vmatprep.subr.bf16.mxu0 0
  %269 = vmatpush1.bf16.msra.mxu0 0
  %270 = vmatprep.subr.bf16.mxu0 0
  %271 = vmatpush1.bf16.msra.mxu0 0
  %272 = vmatprep.subr.bf16.mxu0 0
  %273 = vmatpush1.bf16.msra.mxu0 0
  %274 = vmatprep.subr.bf16.mxu0 0
  %275 = vmatpush1.bf16.msra.mxu0 0
  %276 = vmatprep.subr.bf16.mxu0 0
  %277 = vmatpush1.bf16.msra.mxu0 %v257
  %278 = vmatprep.subr.bf16.mxu0 0
  %279 = vmatpush1.bf16.msra.mxu0 %v256
  %280 = vmatprep.subr.bf16.mxu0 0
  %281 = vmatpush2.bf16.msra.mxu0 0
  %282 = vmatprep.subr.bf16.mxu0 0
  %283 = vmatpush2.bf16.msra.mxu0 0
  %284 = vmatprep.subr.bf16.mxu0 0
  %285 = vmatpush2.bf16.msra.mxu0 0
  %286 = vmatprep.subr.bf16.mxu0 0
  %287 = vmatpush2.bf16.msra.mxu0 0
  %288 = vmatprep.subr.bf16.mxu0 0
  %289 = vmatpush2.bf16.msra.mxu0 0
  %290 = vmatprep.subr.bf16.mxu0 0
  %291 = vmatpush2.bf16.msra.mxu0 0
  %292 = vmatprep.subr.bf16.mxu0 0
  %293 = vmatpush2.bf16.msra.mxu0 0
  %294 = vmatprep.subr.bf16.mxu0 0
  %295 = vmatpush2.bf16.msra.mxu0 0
  %296 = vmatprep.mubr.bf16.mxu0 0
  %297 = vmatmul.mubr.bf16.gmra.mxu0 %v262
  %v298 = vpop.f32.mrf.mxu0
  %v299 = vadd.f32 %v246, %v298
  %v300 = vpop.f32.mrf.mxu0
  %v301 = vpop.f32.mrf.mxu0
  %v302 = vpop.f32.mrf.mxu0
  %303 = vdwg.mxu0
  %v304 = vsub.f32 %v26, %v299
  %305 = vst.msk [vmem:[%s6] sm:$0xff] %vm28, %v304
  %307 = vrot.lane.b32.xlu0 %v299, 120
  %v308 = vpop.permute.xlu0 %307
  %vm310 = vcmask 130048
  %311 = vst.msk [vmem:[%s7] sm:$0xff] %vm310, %v308
  // Predicated region
  $region26: #{ics_forward.3} parent=0 // pred_check
    _
  $region27: #{ics_forward.3} parent=0 // pred_check_branch
    %313 = sbr.rel (0) target = $region29
  $region28: #{ics_forward.3} parent=0 // pred_region
    _
  $region29: #{ics_forward.3} parent=0 // pred_fallthru
    _
  // Predicated region
  $region30: #{ics_forward.3} parent=0 // pred_check
    _
  $region31: #{ics_forward.3} parent=0 // pred_check_branch
    %315 = sbr.rel (0) target = $region33
  $region32: #{ics_forward.3} parent=0 // pred_region
    _
  $region33: #{ics_forward.3} parent=0 // pred_fallthru
    _
  // Predicated region
  $region34: #{ics_forward.3} parent=0 // pred_check
    _
  $region35: #{ics_forward.3} parent=0 // pred_check_branch
    %317 = sbr.rel (0) target = $region37
  $region36: #{ics_forward.3} parent=0 // pred_region
    _
  $region37: #{ics_forward.3} parent=0 // pred_fallthru
    _
  // Predicated region
  $region38: #{ics_forward.3} parent=0 // pred_check
    _
  $region39: #{ics_forward.3} parent=0 // pred_check_branch
    %319 = sbr.rel (0) target = $region41
  $region40: #{ics_forward.3} parent=0 // pred_region
    _
  $region41: #{ics_forward.3} parent=0 // pred_fallthru
    _

// kernel: ics_forward.5
$region0: #{ics_forward.5}
  #allocation0 [shape = 'u32[]', space=smem, size = 0x4, offset = 0x4, fixed_abs, tag = 'smem constant byte address 0x4 - core index']
  #allocation1 [shape = 'u32[144,128]{1,0:T(1,128)}', space=vmem, size = 0x12000, scoped, tag = 'internal scratch']
  #allocation2 [shape = 'f32[1,1]{1,0:T(1,128)S(1)}', space=vmem, size = 0x200, scoped, tag = 'scoped memory for ics_forward.5']
  %s0 = inlined_call_operand.vmem [shape: f32[8,32], index: 0, kind: input, shape index: {}]
  %s1 = inlined_call_operand.vmem [shape: f32[1,32], index: 1, kind: input, shape index: {}]
  %s2 = inlined_call_operand.vmem [shape: f32[1,32], index: 2, kind: input, shape index: {}]
  %s3 = inlined_call_operand.vmem [shape: bf16[1,32], index: 3, kind: input, shape index: {}]
  %s4 = inlined_call_operand.<no memory space> [shape: f32[1,1], index: 4, kind: input, shape index: {}]
  %s5 = inlined_call_operand.hbm [shape: f32[1,8], index: 5, kind: output, shape index: {}]
  %s6 = sld [smem:[#allocation0]]
  $region30: #{ics_forward.5} parent=0
    _
  %s8 = ssub.s32 1, %s6
  %s9 = scalar_select 0, %s8, %s6
  %v10 = vstv %s4
  %11 = vst [vmem:[#allocation2] sm:$0x1] %v10
  $region1: #{ics_forward.5} parent=0
    #allocation3 [shape = 'u8[512]{0}', space=vmem, size = 0x400, scoped, tag = 'output window, operand 0, single buffered']
    #allocation4 [shape = 's32[1]{0}', space=sflag, size = 0x4, scoped, tag = 'scoped memory for ics_forward.5']
    %12 = vsyncpa [#allocation4], 0
    // Predicated region
    $region2: #{ics_forward.5} parent=1 // pred_check
      _
    $region3: #{ics_forward.5} parent=1 // pred_check_branch
      %14 = sbr.rel (0) target = $region5
    $region4: #{ics_forward.5} parent=1 // pred_region
      _
    $region5: #{ics_forward.5} parent=1 // pred_fallthru
      _
    // Predicated region
    $region6: #{ics_forward.5} parent=1 // pred_check
      _
    $region7: #{ics_forward.5} parent=1 // pred_check_branch
      %16 = sbr.rel (0) target = $region9
    $region8: #{ics_forward.5} parent=1 // pred_region
      _
    $region9: #{ics_forward.5} parent=1 // pred_fallthru
      _
    // Predicated region
    $region10: #{ics_forward.5} parent=1 // pred_check
      _
    $region11: #{ics_forward.5} parent=1 // pred_check_branch
      %18 = sbr.rel (0) target = $region13
    $region12: #{ics_forward.5} parent=1 // pred_region
      _
    $region13: #{ics_forward.5} parent=1 // pred_fallthru
      _
    // Predicated region
    $region14: #{ics_forward.5} parent=1 // pred_check
      _
    $region15: #{ics_forward.5} parent=1 // pred_check_branch
      %20 = sbr.rel (0) target = $region17
    $region16: #{ics_forward.5} parent=1 // pred_region
      _
    $region17: #{ics_forward.5} parent=1 // pred_fallthru
      _
    // Predicated region
    $region18: #{ics_forward.5} parent=1 // pred_check
      _
    $region19: #{ics_forward.5} parent=1 // pred_check_branch
      %22 = sbr.rel (0) target = $region21
    $region20: #{ics_forward.5} parent=1 // pred_region
      _
    $region21: #{ics_forward.5} parent=1 // pred_fallthru
      _
    %v24 = vld [vmem:[%s0] sm:$0xff]
    %vm25 = vcmask 261120
    %v26 = vsel %vm25, %v24, 0.0
    %v27 = vrot.slane %v26, 4
    %v28 = vadd.f32 %v26, %v27
    %v29 = vrot.slane %v28, 2
    %v30 = vadd.f32 %v28, %v29
    %v31 = vrot.slane %v30, 1
    %v32 = vadd.f32 %v30, %v31
    %v33 = vrcp.pop 8.0
    %v34 = vmul.f32 %v32, %v33
    %v35 = vsub.f32 %v24, %v34
    %v36 = vmul.f32 %v35, %v35
    %v37 = vsel %vm25, %v36, 0.0
    %v38 = vrot.slane %v37, 4
    %v39 = vadd.f32 %v37, %v38
    %v40 = vrot.slane %v39, 2
    %v41 = vadd.f32 %v39, %v40
    %v42 = vrot.slane %v41, 1
    %v43 = vadd.f32 %v41, %v42
    %v44 = vmul.f32 %v43, %v33
    %v45 = vadd.f32 %v44, 1e-05
    %v46 = vrsqrt.pop %v45
    %v47 = vmul.f32 %v35, %v46
    %v48 = vld [vmem:[%s1] sm:$0x1]
    %v50 = vlaneseq
    %v51 = vshrl.u32 %v50, 7
    %v52 = vsub.s32 0, %v51
    %v53 = vrot.slane %v48, %v52
    %v55 = vmul.f32 %v47, %v53
    %v56 = vld [vmem:[%s2] sm:$0x1]
    %v58 = vlaneseq
    %v59 = vshrl.u32 %v58, 7
    %v60 = vsub.s32 0, %v59
    %v61 = vrot.slane %v56, %v60
    %v63 = vadd.f32 %v55, %v61
    %vm64 = vcmp.gt.f32.partialorder %v63, 0.0
    %v65 = vmul.f32 %v63, 0.01
    %v66 = vsel %vm64, %v63, %v65
    %v67 = vld [vmem:[%s3] sm:$0x1]
    %v68 = vpack.c.bf16 %v66, %v66
    %v69 = vld [vmem:[#allocation2] sm:$0x1]
    %71 = vset.pattern.permute.xlu0 0
    %72 = vperm.xlu0 %71, %v69
    %v73 = vpop.permute.xlu0 %72
    %v75 = vlaneseq
    %v76 = vshrl.u32 %v75, 7
    %v77 = vsub.s32 0, %v76
    %v78 = vrot.slane %v73, %v77
    %v80 = vsel %vm25, %v67, 0
    %v83 = vsel %vm25, %v68, 0
    %85 = vmatprep.subr.bf16.mxu0 0
    %86 = vmatpush1.bf16.xpose.msra.mxu0 0
    %87 = vmatprep.subr.bf16.mxu0 0
    %88 = vmatpush1.bf16.xpose.msra.mxu0 0
    %89 = vmatprep.subr.bf16.mxu0 0
    %90 = vmatpush1.bf16.xpose.msra.mxu0 0
    %91 = vmatprep.subr.bf16.mxu0 0
    %92 = vmatpush1.bf16.xpose.msra.mxu0 0
    %93 = vmatprep.subr.bf16.mxu0 0
    %94 = vmatpush1.bf16.xpose.msra.mxu0 0
    %95 = vmatprep.subr.bf16.mxu0 0
    %96 = vmatpush1.bf16.xpose.msra.mxu0 0
    %97 = vmatprep.subr.bf16.mxu0 0
    %98 = vmatpush1.bf16.xpose.msra.mxu0 0
    %99 = vmatprep.subr.bf16.mxu0 0
    %100 = vmatpush1.bf16.xpose.msra.mxu0 %v83
    %101 = vmatprep.subr.bf16.mxu0 0
    %102 = vmatpush2.bf16.xpose.msra.mxu0 0
    %103 = vmatprep.subr.bf16.mxu0 0
    %104 = vmatpush2.bf16.xpose.msra.mxu0 0
    %105 = vmatprep.subr.bf16.mxu0 0
    %106 = vmatpush2.bf16.xpose.msra.mxu0 0
    %107 = vmatprep.subr.bf16.mxu0 0
    %108 = vmatpush2.bf16.xpose.msra.mxu0 0
    %109 = vmatprep.subr.bf16.mxu0 0
    %110 = vmatpush2.bf16.xpose.msra.mxu0 0
    %111 = vmatprep.subr.bf16.mxu0 0
    %112 = vmatpush2.bf16.xpose.msra.mxu0 0
    %113 = vmatprep.subr.bf16.mxu0 0
    %114 = vmatpush2.bf16.xpose.msra.mxu0 0
    %115 = vmatprep.subr.bf16.mxu0 0
    %116 = vmatpush2.bf16.xpose.msra.mxu0 0
    %117 = vmatprep.mubr.bf16.mxu0 0
    %118 = vmatmul.mubr.bf16.gmra.mxu0 %v80
    %v119 = vpop.f32.mrf.mxu0
    %v120 = vadd.f32 %v78, %v119
    %v121 = vpop.f32.mrf.mxu0
    %v122 = vpop.f32.mrf.mxu0
    %v123 = vpop.f32.mrf.mxu0
    %124 = vdwg.mxu0
    %vm125 = vcmask 57344
    %126 = vst.msk [vmem:[#allocation3] sm:$0x1] %vm125, %v120
    // Predicated region
    $region22: #{ics_forward.5} parent=1 // pred_check
      _
    $region23: #{ics_forward.5} parent=1 // pred_check_branch
      %128 = sbr.rel (0) target = $region25
    $region24: #{ics_forward.5} parent=1 // pred_region
      %s130 = ssub.s32 16, 16
      %131 = vsyncadd [#allocation4], %s130
      %s133 = sshll.u32 [#allocation3], 4
      %s134 = int_to_ptr.vmem [resolvable:$true] %s133
      %136 = dma.vmem_to_hbm [thread:$0]  %s134, 16, %s5, [#allocation4]
    $region25: #{ics_forward.5} parent=1 // pred_fallthru
      _
    // Predicated region
    $region26: #{ics_forward.5} parent=1 // pred_check
      _
    $region27: #{ics_forward.5} parent=1 // pred_check_branch
      %138 = sbr.rel (0) target = $region29
    $region28: #{ics_forward.5} parent=1 // pred_region
      %139 = dma.done [#allocation4], 16
    $region29: #{ics_forward.5} parent=1 // pred_fallthru
      _
    %140 = vsyncpa [#allocation4], 1

// kernel: ics_forward.4
$region0: #{ics_forward.4}
  #allocation0 [shape = 'u32[]', space=smem, size = 0x4, offset = 0x4, fixed_abs, tag = 'smem constant byte address 0x4 - core index']
  #allocation1 [shape = 'u32[144,128]{1,0:T(1,128)}', space=vmem, size = 0x12000, scoped, tag = 'internal scratch']
  %s0 = inlined_call_operand.vmem [shape: f32[8,8], index: 0, kind: input, shape index: {}]
  %s1 = inlined_call_operand.vmem [shape: f32[8,16], index: 1, kind: input, shape index: {}]
  %s2 = inlined_call_operand.vmem [shape: f32[3,8], index: 2, kind: input, shape index: {}]
  %s3 = inlined_call_operand.vmem [shape: f32[2,8,8], index: 3, kind: input, shape index: {}]
  %s4 = inlined_call_operand.vmem [shape: bf16[2,8,32], index: 4, kind: input, shape index: {}]
  %s5 = inlined_call_operand.vmem [shape: f32[2,1,32], index: 5, kind: input, shape index: {}]
  %s6 = inlined_call_operand.vmem [shape: bf16[32,16], index: 6, kind: input, shape index: {}]
  %s7 = inlined_call_operand.vmem [shape: f32[1,16], index: 7, kind: input, shape index: {}]
  %s8 = inlined_call_operand.vmem [shape: bf16[16,32], index: 8, kind: input, shape index: {}]
  %s9 = inlined_call_operand.vmem [shape: f32[1,32], index: 9, kind: input, shape index: {}]
  %s10 = inlined_call_operand.vmem [shape: f32[8,32], index: 10, kind: output, shape index: {}]
  %s11 = sld [smem:[#allocation0]]
  $region50: #{ics_forward.4} parent=0
    _
  %s13 = ssub.s32 1, %s11
  %s14 = scalar_select 0, %s13, %s11
  // Predicated region
  $region2: #{ics_forward.4} parent=0 // pred_check
    _
  $region3: #{ics_forward.4} parent=0 // pred_check_branch
    %16 = sbr.rel (0) target = $region5
  $region4: #{ics_forward.4} parent=0 // pred_region
    _
  $region5: #{ics_forward.4} parent=0 // pred_fallthru
    _
  // Predicated region
  $region6: #{ics_forward.4} parent=0 // pred_check
    _
  $region7: #{ics_forward.4} parent=0 // pred_check_branch
    %18 = sbr.rel (0) target = $region9
  $region8: #{ics_forward.4} parent=0 // pred_region
    _
  $region9: #{ics_forward.4} parent=0 // pred_fallthru
    _
  // Predicated region
  $region10: #{ics_forward.4} parent=0 // pred_check
    _
  $region11: #{ics_forward.4} parent=0 // pred_check_branch
    %20 = sbr.rel (0) target = $region13
  $region12: #{ics_forward.4} parent=0 // pred_region
    _
  $region13: #{ics_forward.4} parent=0 // pred_fallthru
    _
  // Predicated region
  $region14: #{ics_forward.4} parent=0 // pred_check
    _
  $region15: #{ics_forward.4} parent=0 // pred_check_branch
    %22 = sbr.rel (0) target = $region17
  $region16: #{ics_forward.4} parent=0 // pred_region
    _
  $region17: #{ics_forward.4} parent=0 // pred_fallthru
    _
  // Predicated region
  $region18: #{ics_forward.4} parent=0 // pred_check
    _
  $region19: #{ics_forward.4} parent=0 // pred_check_branch
    %24 = sbr.rel (0) target = $region21
  $region20: #{ics_forward.4} parent=0 // pred_region
    _
  $region21: #{ics_forward.4} parent=0 // pred_fallthru
    _
  // Predicated region
  $region22: #{ics_forward.4} parent=0 // pred_check
    _
  $region23: #{ics_forward.4} parent=0 // pred_check_branch
    %26 = sbr.rel (0) target = $region25
  $region24: #{ics_forward.4} parent=0 // pred_region
    _
  $region25: #{ics_forward.4} parent=0 // pred_fallthru
    _
  // Predicated region
  $region26: #{ics_forward.4} parent=0 // pred_check
    _
  $region27: #{ics_forward.4} parent=0 // pred_check_branch
    %28 = sbr.rel (0) target = $region29
  $region28: #{ics_forward.4} parent=0 // pred_region
    _
  $region29: #{ics_forward.4} parent=0 // pred_fallthru
    _
  // Predicated region
  $region30: #{ics_forward.4} parent=0 // pred_check
    _
  $region31: #{ics_forward.4} parent=0 // pred_check_branch
    %30 = sbr.rel (0) target = $region33
  $region32: #{ics_forward.4} parent=0 // pred_region
    _
  $region33: #{ics_forward.4} parent=0 // pred_fallthru
    _
  // Predicated region
  $region34: #{ics_forward.4} parent=0 // pred_check
    _
  $region35: #{ics_forward.4} parent=0 // pred_check_branch
    %32 = sbr.rel (0) target = $region37
  $region36: #{ics_forward.4} parent=0 // pred_region
    _
  $region37: #{ics_forward.4} parent=0 // pred_fallthru
    _
  // Predicated region
  $region38: #{ics_forward.4} parent=0 // pred_check
    _
  $region39: #{ics_forward.4} parent=0 // pred_check_branch
    %34 = sbr.rel (0) target = $region41
  $region40: #{ics_forward.4} parent=0 // pred_region
    _
  $region41: #{ics_forward.4} parent=0 // pred_fallthru
    _
  %v36 = vld [vmem:[%s0] sm:$0xff]
  %v37 = vld [vmem:[%s2] sm:$0x7]
  %v38 = vpack.c.bf16 %v37, %v37
  %v39 = vld [vmem:[%s3] sm:$0xff]
  %vm40 = vcmask 64512
  %v42 = vsel %vm40, %v36, 0
  %44 = vmatprep.subr.mxu0 0.0
  %45 = vmatpush1.msra.mxu0 0.0
  %46 = vmatprep.subr.mxu0 0.0
  %47 = vmatpush1.msra.mxu0 0.0
  %48 = vmatprep.subr.mxu0 0.0
  %49 = vmatpush1.msra.mxu0 0.0
  %50 = vmatprep.subr.mxu0 0.0
  %51 = vmatpush1.msra.mxu0 0.0
  %52 = vmatprep.subr.mxu0 0.0
  %53 = vmatpush1.msra.mxu0 0.0
  %54 = vmatprep.subr.mxu0 0.0
  %55 = vmatpush1.msra.mxu0 0.0
  %56 = vmatprep.subr.mxu0 0.0
  %57 = vmatpush1.msra.mxu0 0.0
  %58 = vmatprep.subr.mxu0 0.0
  %59 = vmatpush1.msra.mxu0 0.0
  %60 = vmatprep.subr.mxu0 0.0
  %61 = vmatpush1.msra.mxu0 0.0
  %62 = vmatprep.subr.mxu0 0.0
  %63 = vmatpush1.msra.mxu0 0.0
  %64 = vmatprep.subr.mxu0 0.0
  %65 = vmatpush1.msra.mxu0 0.0
  %66 = vmatprep.subr.mxu0 0.0
  %67 = vmatpush1.msra.mxu0 0.0
  %68 = vmatprep.subr.mxu0 0.0
  %69 = vmatpush1.msra.mxu0 0.0
  %70 = vmatprep.subr.mxu0 0.0
  %71 = vmatpush1.msra.mxu0 0.0
  %72 = vmatprep.subr.mxu0 0.0
  %73 = vmatpush1.msra.mxu0 0.0
  %74 = vmatprep.subr.mxu0 0.0
  %75 = vmatpush1.msra.mxu0 %v39
  %76 = vmatprep.subr.mxu0 0.0
  %77 = vmatpush2.msra.mxu0 0.0
  %78 = vmatprep.subr.mxu0 0.0
  %79 = vmatpush2.msra.mxu0 0.0
  %80 = vmatprep.subr.mxu0 0.0
  %81 = vmatpush2.msra.mxu0 0.0
  %82 = vmatprep.subr.mxu0 0.0
  %83 = vmatpush2.msra.mxu0 0.0
  %84 = vmatprep.subr.mxu0 0.0
  %85 = vmatpush2.msra.mxu0 0.0
  %86 = vmatprep.subr.mxu0 0.0
  %87 = vmatpush2.msra.mxu0 0.0
  %88 = vmatprep.subr.mxu0 0.0
  %89 = vmatpush2.msra.mxu0 0.0
  %90 = vmatprep.subr.mxu0 0.0
  %91 = vmatpush2.msra.mxu0 0.0
  %92 = vmatprep.subr.mxu0 0.0
  %93 = vmatpush2.msra.mxu0 0.0
  %94 = vmatprep.subr.mxu0 0.0
  %95 = vmatpush2.msra.mxu0 0.0
  %96 = vmatprep.subr.mxu0 0.0
  %97 = vmatpush2.msra.mxu0 0.0
  %98 = vmatprep.subr.mxu0 0.0
  %99 = vmatpush2.msra.mxu0 0.0
  %100 = vmatprep.subr.mxu0 0.0
  %101 = vmatpush2.msra.mxu0 0.0
  %102 = vmatprep.subr.mxu0 0.0
  %103 = vmatpush2.msra.mxu0 0.0
  %104 = vmatprep.subr.mxu0 0.0
  %105 = vmatpush2.msra.mxu0 0.0
  %106 = vmatprep.subr.mxu0 0.0
  %107 = vmatpush2.msra.mxu0 0.0
  %108 = vmatprep.mubr.f32.mxu0 0.0
  %109 = vmatmul.mubr.f32.gmra.mxu0 %v42
  %v110 = vpop.f32.mrf.mxu0
  %v111 = vadd.f32 0.0, %v110
  %v112 = vpop.f32.mrf.mxu0
  %113 = vdwg.mxu0
  %v115 = vsel %vm40, %v37, 0
  %117 = vmatprep.subr.mxu0 0.0
  %118 = vmatpush1.msra.mxu0 0.0
  %119 = vmatprep.subr.mxu0 0.0
  %120 = vmatpush1.msra.mxu0 0.0
  %121 = vmatprep.subr.mxu0 0.0
  %122 = vmatpush1.msra.mxu0 0.0
  %123 = vmatprep.subr.mxu0 0.0
  %124 = vmatpush1.msra.mxu0 0.0
  %125 = vmatprep.subr.mxu0 0.0
  %126 = vmatpush1.msra.mxu0 0.0
  %127 = vmatprep.subr.mxu0 0.0
  %128 = vmatpush1.msra.mxu0 0.0
  %129 = vmatprep.subr.mxu0 0.0
  %130 = vmatpush1.msra.mxu0 0.0
  %131 = vmatprep.subr.mxu0 0.0
  %132 = vmatpush1.msra.mxu0 0.0
  %133 = vmatprep.subr.mxu0 0.0
  %134 = vmatpush1.msra.mxu0 0.0
  %135 = vmatprep.subr.mxu0 0.0
  %136 = vmatpush1.msra.mxu0 0.0
  %137 = vmatprep.subr.mxu0 0.0
  %138 = vmatpush1.msra.mxu0 0.0
  %139 = vmatprep.subr.mxu0 0.0
  %140 = vmatpush1.msra.mxu0 0.0
  %141 = vmatprep.subr.mxu0 0.0
  %142 = vmatpush1.msra.mxu0 0.0
  %143 = vmatprep.subr.mxu0 0.0
  %144 = vmatpush1.msra.mxu0 0.0
  %145 = vmatprep.subr.mxu0 0.0
  %146 = vmatpush1.msra.mxu0 0.0
  %147 = vmatprep.subr.mxu0 0.0
  %148 = vmatpush1.msra.mxu0 %v39
  %149 = vmatprep.subr.mxu0 0.0
  %150 = vmatpush2.msra.mxu0 0.0
  %151 = vmatprep.subr.mxu0 0.0
  %152 = vmatpush2.msra.mxu0 0.0
  %153 = vmatprep.subr.mxu0 0.0
  %154 = vmatpush2.msra.mxu0 0.0
  %155 = vmatprep.subr.mxu0 0.0
  %156 = vmatpush2.msra.mxu0 0.0
  %157 = vmatprep.subr.mxu0 0.0
  %158 = vmatpush2.msra.mxu0 0.0
  %159 = vmatprep.subr.mxu0 0.0
  %160 = vmatpush2.msra.mxu0 0.0
  %161 = vmatprep.subr.mxu0 0.0
  %162 = vmatpush2.msra.mxu0 0.0
  %163 = vmatprep.subr.mxu0 0.0
  %164 = vmatpush2.msra.mxu0 0.0
  %165 = vmatprep.subr.mxu0 0.0
  %166 = vmatpush2.msra.mxu0 0.0
  %167 = vmatprep.subr.mxu0 0.0
  %168 = vmatpush2.msra.mxu0 0.0
  %169 = vmatprep.subr.mxu0 0.0
  %170 = vmatpush2.msra.mxu0 0.0
  %171 = vmatprep.subr.mxu0 0.0
  %172 = vmatpush2.msra.mxu0 0.0
  %173 = vmatprep.subr.mxu0 0.0
  %174 = vmatpush2.msra.mxu0 0.0
  %175 = vmatprep.subr.mxu0 0.0
  %176 = vmatpush2.msra.mxu0 0.0
  %177 = vmatprep.subr.mxu0 0.0
  %178 = vmatpush2.msra.mxu0 0.0
  %179 = vmatprep.subr.mxu0 0.0
  %180 = vmatpush2.msra.mxu0 0.0
  %181 = vmatprep.mubr.f32.mxu0 0.0
  %182 = vmatmul.mubr.f32.gmra.mxu0 %v115
  %v183 = vpop.f32.mrf.mxu0
  %v184 = vadd.f32 0.0, %v183
  %v185 = vpop.f32.mrf.mxu0
  %186 = vdwg.mxu0
  %v188 = vsel %vm40, %v111, 0
  %v191 = vsel %vm40, %v184, 0
  %193 = vmatprep.subr.mxu0 0.0
  %194 = vmatpush1.xpose.msra.mxu0 0.0
  %195 = vmatprep.subr.mxu0 0.0
  %196 = vmatpush1.xpose.msra.mxu0 0.0
  %197 = vmatprep.subr.mxu0 0.0
  %198 = vmatpush1.xpose.msra.mxu0 0.0
  %199 = vmatprep.subr.mxu0 0.0
  %200 = vmatpush1.xpose.msra.mxu0 0.0
  %201 = vmatprep.subr.mxu0 0.0
  %202 = vmatpush1.xpose.msra.mxu0 0.0
  %203 = vmatprep.subr.mxu0 0.0
  %204 = vmatpush1.xpose.msra.mxu0 0.0
  %205 = vmatprep.subr.mxu0 0.0
  %206 = vmatpush1.xpose.msra.mxu0 0.0
  %207 = vmatprep.subr.mxu0 0.0
  %208 = vmatpush1.xpose.msra.mxu0 0.0
  %209 = vmatprep.subr.mxu0 0.0
  %210 = vmatpush1.xpose.msra.mxu0 0.0
  %211 = vmatprep.subr.mxu0 0.0
  %212 = vmatpush1.xpose.msra.mxu0 0.0
  %213 = vmatprep.subr.mxu0 0.0
  %214 = vmatpush1.xpose.msra.mxu0 0.0
  %215 = vmatprep.subr.mxu0 0.0
  %216 = vmatpush1.xpose.msra.mxu0 0.0
  %217 = vmatprep.subr.mxu0 0.0
  %218 = vmatpush1.xpose.msra.mxu0 0.0
  %219 = vmatprep.subr.mxu0 0.0
  %220 = vmatpush1.xpose.msra.mxu0 0.0
  %221 = vmatprep.subr.mxu0 0.0
  %222 = vmatpush1.xpose.msra.mxu0 0.0
  %223 = vmatprep.subr.mxu0 0.0
  %224 = vmatpush1.xpose.msra.mxu0 %v191
  %225 = vmatprep.subr.mxu0 0.0
  %226 = vmatpush2.xpose.msra.mxu0 0.0
  %227 = vmatprep.subr.mxu0 0.0
  %228 = vmatpush2.xpose.msra.mxu0 0.0
  %229 = vmatprep.subr.mxu0 0.0
  %230 = vmatpush2.xpose.msra.mxu0 0.0
  %231 = vmatprep.subr.mxu0 0.0
  %232 = vmatpush2.xpose.msra.mxu0 0.0
  %233 = vmatprep.subr.mxu0 0.0
  %234 = vmatpush2.xpose.msra.mxu0 0.0
  %235 = vmatprep.subr.mxu0 0.0
  %236 = vmatpush2.xpose.msra.mxu0 0.0
  %237 = vmatprep.subr.mxu0 0.0
  %238 = vmatpush2.xpose.msra.mxu0 0.0
  %239 = vmatprep.subr.mxu0 0.0
  %240 = vmatpush2.xpose.msra.mxu0 0.0
  %241 = vmatprep.subr.mxu0 0.0
  %242 = vmatpush2.xpose.msra.mxu0 0.0
  %243 = vmatprep.subr.mxu0 0.0
  %244 = vmatpush2.xpose.msra.mxu0 0.0
  %245 = vmatprep.subr.mxu0 0.0
  %246 = vmatpush2.xpose.msra.mxu0 0.0
  %247 = vmatprep.subr.mxu0 0.0
  %248 = vmatpush2.xpose.msra.mxu0 0.0
  %249 = vmatprep.subr.mxu0 0.0
  %250 = vmatpush2.xpose.msra.mxu0 0.0
  %251 = vmatprep.subr.mxu0 0.0
  %252 = vmatpush2.xpose.msra.mxu0 0.0
  %253 = vmatprep.subr.mxu0 0.0
  %254 = vmatpush2.xpose.msra.mxu0 0.0
  %255 = vmatprep.subr.mxu0 0.0
  %256 = vmatpush2.xpose.msra.mxu0 0.0
  %257 = vmatprep.mubr.f32.mxu0 0.0
  %258 = vmatmul.mubr.f32.gmra.mxu0 %v188
  %v259 = vpop.f32.mrf.mxu0
  %v260 = vadd.f32 0.0, %v259
  %v261 = vpop.f32.mrf.mxu0
  %262 = vdwg.mxu0
  %vm263 = vcmask 23552
  %v264 = vsel %vm263, %v260, -inf
  %265 = vmax.xlane.f32.xlu0 %v264
  %v266 = vpop.xlane.xlu0 %265
  %vm267 = vcmp.ge.f32.partialorder %v260, %v266
  %v268 = vsel %vm267, -inf, %v260
  %v269 = vsel %vm263, %v268, -inf
  %270 = vmax.xlane.f32.xlu0 %v269
  %v271 = vpop.xlane.xlu0 %270
  %vm272 = vcmp.ge.f32.partialorder %v268, %v271
  %v273 = vsel %vm272, -inf, %v268
  %v274 = vsel %vm263, %v273, -inf
  %275 = vmax.xlane.f32.xlu0 %v274
  %v276 = vpop.xlane.xlu0 %275
  %vm277 = vcmp.ge.f32.partialorder %v260, %v276
  %v278 = vsub.f32 %v260, %v266
  %v279 = vmul.f32 %v278, 1.442695
  %v280 = vpow.pop %v279
  %v281 = vsel %vm277, %v280, 0.0
  %v282 = vsel %vm263, %v281, 0.0
  %283 = vadd.xlane.f32.xlu0 %v282
  %v284 = vpop.xlane.xlu0 %283
  %v285 = vrcp.pop %v284
  %v286 = vmul.f32 %v281, %v285
  %v287 = vpack.c.bf16 %v286, %v286
  %v289 = vsel %vm263, %v287, 0
  %vm291 = vcmask 1040384
  %vm292 = vcmask 1041408
  %v293 = vsel %vm291, 4294967295, 65535
  %v294 = vsel %vm292, %v293, 0
  %v296 = vand.u32 %v38, %v294
  %298 = vmatprep.subr.bf16.mxu0 0
  %299 = vmatpush1.bf16.msra.mxu0 0
  %300 = vmatprep.subr.bf16.mxu0 0
  %301 = vmatpush1.bf16.msra.mxu0 0
  %302 = vmatprep.subr.bf16.mxu0 0
  %303 = vmatpush1.bf16.msra.mxu0 0
  %304 = vmatprep.subr.bf16.mxu0 0
  %305 = vmatpush1.bf16.msra.mxu0 0
  %306 = vmatprep.subr.bf16.mxu0 0
  %307 = vmatpush1.bf16.msra.mxu0 0
  %308 = vmatprep.subr.bf16.mxu0 0
  %309 = vmatpush1.bf16.msra.mxu0 0
  %310 = vmatprep.subr.bf16.mxu0 0
  %311 = vmatpush1.bf16.msra.mxu0 0
  %312 = vmatprep.subr.bf16.mxu0 0
  %313 = vmatpush1.bf16.msra.mxu0 %v296
  %314 = vmatprep.subr.bf16.mxu0 0
  %315 = vmatpush2.bf16.msra.mxu0 0
  %316 = vmatprep.subr.bf16.mxu0 0
  %317 = vmatpush2.bf16.msra.mxu0 0
  %318 = vmatprep.subr.bf16.mxu0 0
  %319 = vmatpush2.bf16.msra.mxu0 0
  %320 = vmatprep.subr.bf16.mxu0 0
  %321 = vmatpush2.bf16.msra.mxu0 0
  %322 = vmatprep.subr.bf16.mxu0 0
  %323 = vmatpush2.bf16.msra.mxu0 0
  %324 = vmatprep.subr.bf16.mxu0 0
  %325 = vmatpush2.bf16.msra.mxu0 0
  %326 = vmatprep.subr.bf16.mxu0 0
  %327 = vmatpush2.bf16.msra.mxu0 0
  %328 = vmatprep.subr.bf16.mxu0 0
  %329 = vmatpush2.bf16.msra.mxu0 0
  %330 = vmatprep.mubr.bf16.mxu0 0
  %331 = vmatmul.mubr.bf16.gmra.mxu0 %v289
  %v332 = vpop.f32.mrf.mxu0
  %v333 = vadd.f32 0.0, %v332
  %v334 = vpop.f32.mrf.mxu0
  %v335 = vpop.f32.mrf.mxu0
  %v336 = vpop.f32.mrf.mxu0
  %337 = vdwg.mxu0
  %v338 = vpack.c.bf16 %v333, %v333
  %v339 = vld [vmem:[%s4] sm:$0xf]
  %v340 = vld [vmem:[%s5] sm:$0x1]
  %v342 = vlaneseq
  %v343 = vshrl.u32 %v342, 7
  %v344 = vsub.s32 0, %v343
  %v345 = vrot.slane %v340, %v344
  %v348 = vsel %vm40, %v338, 0
  %vm350 = vcmask 1043456
  %v352 = vsel %vm350, %v339, 0
  %354 = vmatprep.subr.bf16.mxu0 0
  %355 = vmatpush1.bf16.msra.mxu0 0
  %356 = vmatprep.subr.bf16.mxu0 0
  %357 = vmatpush1.bf16.msra.mxu0 0
  %358 = vmatprep.subr.bf16.mxu0 0
  %359 = vmatpush1.bf16.msra.mxu0 0
  %360 = vmatprep.subr.bf16.mxu0 0
  %361 = vmatpush1.bf16.msra.mxu0 0
  %362 = vmatprep.subr.bf16.mxu0 0
  %363 = vmatpush1.bf16.msra.mxu0 0
  %364 = vmatprep.subr.bf16.mxu0 0
  %365 = vmatpush1.bf16.msra.mxu0 0
  %366 = vmatprep.subr.bf16.mxu0 0
  %367 = vmatpush1.bf16.msra.mxu0 0
  %368 = vmatprep.subr.bf16.mxu0 0
  %369 = vmatpush1.bf16.msra.mxu0 %v352
  %370 = vmatprep.subr.bf16.mxu0 0
  %371 = vmatpush2.bf16.msra.mxu0 0
  %372 = vmatprep.subr.bf16.mxu0 0
  %373 = vmatpush2.bf16.msra.mxu0 0
  %374 = vmatprep.subr.bf16.mxu0 0
  %375 = vmatpush2.bf16.msra.mxu0 0
  %376 = vmatprep.subr.bf16.mxu0 0
  %377 = vmatpush2.bf16.msra.mxu0 0
  %378 = vmatprep.subr.bf16.mxu0 0
  %379 = vmatpush2.bf16.msra.mxu0 0
  %380 = vmatprep.subr.bf16.mxu0 0
  %381 = vmatpush2.bf16.msra.mxu0 0
  %382 = vmatprep.subr.bf16.mxu0 0
  %383 = vmatpush2.bf16.msra.mxu0 0
  %384 = vmatprep.subr.bf16.mxu0 0
  %385 = vmatpush2.bf16.msra.mxu0 0
  %386 = vmatprep.mubr.bf16.mxu0 0
  %387 = vmatmul.mubr.bf16.gmra.mxu0 %v348
  %v388 = vpop.f32.mrf.mxu0
  %v389 = vadd.f32 %v345, %v388
  %v390 = vpop.f32.mrf.mxu0
  %v391 = vpop.f32.mrf.mxu0
  %v392 = vpop.f32.mrf.mxu0
  %393 = vdwg.mxu0
  %vm394 = vcmp.gt.f32.partialorder %v389, 0.0
  %v395 = vmul.f32 %v389, 0.01
  %v396 = vsel %vm394, %v389, %v395
  %s397 = scalar_lea.vmem %s3, 8
  %v398 = vld [vmem:[%s397] sm:$0xff]
  %399 = vmatprep.subr.mxu0 0.0
  %400 = vmatpush1.msra.mxu0 0.0
  %401 = vmatprep.subr.mxu0 0.0
  %402 = vmatpush1.msra.mxu0 0.0
  %403 = vmatprep.subr.mxu0 0.0
  %404 = vmatpush1.msra.mxu0 0.0
  %405 = vmatprep.subr.mxu0 0.0
  %406 = vmatpush1.msra.mxu0 0.0
  %407 = vmatprep.subr.mxu0 0.0
  %408 = vmatpush1.msra.mxu0 0.0
  %409 = vmatprep.subr.mxu0 0.0
  %410 = vmatpush1.msra.mxu0 0.0
  %411 = vmatprep.subr.mxu0 0.0
  %412 = vmatpush1.msra.mxu0 0.0
  %413 = vmatprep.subr.mxu0 0.0
  %414 = vmatpush1.msra.mxu0 0.0
  %415 = vmatprep.subr.mxu0 0.0
  %416 = vmatpush1.msra.mxu0 0.0
  %417 = vmatprep.subr.mxu0 0.0
  %418 = vmatpush1.msra.mxu0 0.0
  %419 = vmatprep.subr.mxu0 0.0
  %420 = vmatpush1.msra.mxu0 0.0
  %421 = vmatprep.subr.mxu0 0.0
  %422 = vmatpush1.msra.mxu0 0.0
  %423 = vmatprep.subr.mxu0 0.0
  %424 = vmatpush1.msra.mxu0 0.0
  %425 = vmatprep.subr.mxu0 0.0
  %426 = vmatpush1.msra.mxu0 0.0
  %427 = vmatprep.subr.mxu0 0.0
  %428 = vmatpush1.msra.mxu0 0.0
  %429 = vmatprep.subr.mxu0 0.0
  %430 = vmatpush1.msra.mxu0 %v398
  %431 = vmatprep.subr.mxu0 0.0
  %432 = vmatpush2.msra.mxu0 0.0
  %433 = vmatprep.subr.mxu0 0.0
  %434 = vmatpush2.msra.mxu0 0.0
  %435 = vmatprep.subr.mxu0 0.0
  %436 = vmatpush2.msra.mxu0 0.0
  %437 = vmatprep.subr.mxu0 0.0
  %438 = vmatpush2.msra.mxu0 0.0
  %439 = vmatprep.subr.mxu0 0.0
  %440 = vmatpush2.msra.mxu0 0.0
  %441 = vmatprep.subr.mxu0 0.0
  %442 = vmatpush2.msra.mxu0 0.0
  %443 = vmatprep.subr.mxu0 0.0
  %444 = vmatpush2.msra.mxu0 0.0
  %445 = vmatprep.subr.mxu0 0.0
  %446 = vmatpush2.msra.mxu0 0.0
  %447 = vmatprep.subr.mxu0 0.0
  %448 = vmatpush2.msra.mxu0 0.0
  %449 = vmatprep.subr.mxu0 0.0
  %450 = vmatpush2.msra.mxu0 0.0
  %451 = vmatprep.subr.mxu0 0.0
  %452 = vmatpush2.msra.mxu0 0.0
  %453 = vmatprep.subr.mxu0 0.0
  %454 = vmatpush2.msra.mxu0 0.0
  %455 = vmatprep.subr.mxu0 0.0
  %456 = vmatpush2.msra.mxu0 0.0
  %457 = vmatprep.subr.mxu0 0.0
  %458 = vmatpush2.msra.mxu0 0.0
  %459 = vmatprep.subr.mxu0 0.0
  %460 = vmatpush2.msra.mxu0 0.0
  %461 = vmatprep.subr.mxu0 0.0
  %462 = vmatpush2.msra.mxu0 0.0
  %463 = vmatprep.mubr.f32.mxu0 0.0
  %464 = vmatmul.mubr.f32.gmra.mxu0 %v42
  %v465 = vpop.f32.mrf.mxu0
  %v466 = vadd.f32 0.0, %v465
  %v467 = vpop.f32.mrf.mxu0
  %468 = vdwg.mxu0
  %469 = vmatprep.subr.mxu0 0.0
  %470 = vmatpush1.msra.mxu0 0.0
  %471 = vmatprep.subr.mxu0 0.0
  %472 = vmatpush1.msra.mxu0 0.0
  %473 = vmatprep.subr.mxu0 0.0
  %474 = vmatpush1.msra.mxu0 0.0
  %475 = vmatprep.subr.mxu0 0.0
  %476 = vmatpush1.msra.mxu0 0.0
  %477 = vmatprep.subr.mxu0 0.0
  %478 = vmatpush1.msra.mxu0 0.0
  %479 = vmatprep.subr.mxu0 0.0
  %480 = vmatpush1.msra.mxu0 0.0
  %481 = vmatprep.subr.mxu0 0.0
  %482 = vmatpush1.msra.mxu0 0.0
  %483 = vmatprep.subr.mxu0 0.0
  %484 = vmatpush1.msra.mxu0 0.0
  %485 = vmatprep.subr.mxu0 0.0
  %486 = vmatpush1.msra.mxu0 0.0
  %487 = vmatprep.subr.mxu0 0.0
  %488 = vmatpush1.msra.mxu0 0.0
  %489 = vmatprep.subr.mxu0 0.0
  %490 = vmatpush1.msra.mxu0 0.0
  %491 = vmatprep.subr.mxu0 0.0
  %492 = vmatpush1.msra.mxu0 0.0
  %493 = vmatprep.subr.mxu0 0.0
  %494 = vmatpush1.msra.mxu0 0.0
  %495 = vmatprep.subr.mxu0 0.0
  %496 = vmatpush1.msra.mxu0 0.0
  %497 = vmatprep.subr.mxu0 0.0
  %498 = vmatpush1.msra.mxu0 0.0
  %499 = vmatprep.subr.mxu0 0.0
  %500 = vmatpush1.msra.mxu0 %v398
  %501 = vmatprep.subr.mxu0 0.0
  %502 = vmatpush2.msra.mxu0 0.0
  %503 = vmatprep.subr.mxu0 0.0
  %504 = vmatpush2.msra.mxu0 0.0
  %505 = vmatprep.subr.mxu0 0.0
  %506 = vmatpush2.msra.mxu0 0.0
  %507 = vmatprep.subr.mxu0 0.0
  %508 = vmatpush2.msra.mxu0 0.0
  %509 = vmatprep.subr.mxu0 0.0
  %510 = vmatpush2.msra.mxu0 0.0
  %511 = vmatprep.subr.mxu0 0.0
  %512 = vmatpush2.msra.mxu0 0.0
  %513 = vmatprep.subr.mxu0 0.0
  %514 = vmatpush2.msra.mxu0 0.0
  %515 = vmatprep.subr.mxu0 0.0
  %516 = vmatpush2.msra.mxu0 0.0
  %517 = vmatprep.subr.mxu0 0.0
  %518 = vmatpush2.msra.mxu0 0.0
  %519 = vmatprep.subr.mxu0 0.0
  %520 = vmatpush2.msra.mxu0 0.0
  %521 = vmatprep.subr.mxu0 0.0
  %522 = vmatpush2.msra.mxu0 0.0
  %523 = vmatprep.subr.mxu0 0.0
  %524 = vmatpush2.msra.mxu0 0.0
  %525 = vmatprep.subr.mxu0 0.0
  %526 = vmatpush2.msra.mxu0 0.0
  %527 = vmatprep.subr.mxu0 0.0
  %528 = vmatpush2.msra.mxu0 0.0
  %529 = vmatprep.subr.mxu0 0.0
  %530 = vmatpush2.msra.mxu0 0.0
  %531 = vmatprep.subr.mxu0 0.0
  %532 = vmatpush2.msra.mxu0 0.0
  %533 = vmatprep.mubr.f32.mxu0 0.0
  %534 = vmatmul.mubr.f32.gmra.mxu0 %v115
  %v535 = vpop.f32.mrf.mxu0
  %v536 = vadd.f32 0.0, %v535
  %v537 = vpop.f32.mrf.mxu0
  %538 = vdwg.mxu0
  %v540 = vsel %vm40, %v466, 0
  %v543 = vsel %vm40, %v536, 0
  %545 = vmatprep.subr.mxu0 0.0
  %546 = vmatpush1.xpose.msra.mxu0 0.0
  %547 = vmatprep.subr.mxu0 0.0
  %548 = vmatpush1.xpose.msra.mxu0 0.0
  %549 = vmatprep.subr.mxu0 0.0
  %550 = vmatpush1.xpose.msra.mxu0 0.0
  %551 = vmatprep.subr.mxu0 0.0
  %552 = vmatpush1.xpose.msra.mxu0 0.0
  %553 = vmatprep.subr.mxu0 0.0
  %554 = vmatpush1.xpose.msra.mxu0 0.0
  %555 = vmatprep.subr.mxu0 0.0
  %556 = vmatpush1.xpose.msra.mxu0 0.0
  %557 = vmatprep.subr.mxu0 0.0
  %558 = vmatpush1.xpose.msra.mxu0 0.0
  %559 = vmatprep.subr.mxu0 0.0
  %560 = vmatpush1.xpose.msra.mxu0 0.0
  %561 = vmatprep.subr.mxu0 0.0
  %562 = vmatpush1.xpose.msra.mxu0 0.0
  %563 = vmatprep.subr.mxu0 0.0
  %564 = vmatpush1.xpose.msra.mxu0 0.0
  %565 = vmatprep.subr.mxu0 0.0
  %566 = vmatpush1.xpose.msra.mxu0 0.0
  %567 = vmatprep.subr.mxu0 0.0
  %568 = vmatpush1.xpose.msra.mxu0 0.0
  %569 = vmatprep.subr.mxu0 0.0
  %570 = vmatpush1.xpose.msra.mxu0 0.0
  %571 = vmatprep.subr.mxu0 0.0
  %572 = vmatpush1.xpose.msra.mxu0 0.0
  %573 = vmatprep.subr.mxu0 0.0
  %574 = vmatpush1.xpose.msra.mxu0 0.0
  %575 = vmatprep.subr.mxu0 0.0
  %576 = vmatpush1.xpose.msra.mxu0 %v543
  %577 = vmatprep.subr.mxu0 0.0
  %578 = vmatpush2.xpose.msra.mxu0 0.0
  %579 = vmatprep.subr.mxu0 0.0
  %580 = vmatpush2.xpose.msra.mxu0 0.0
  %581 = vmatprep.subr.mxu0 0.0
  %582 = vmatpush2.xpose.msra.mxu0 0.0
  %583 = vmatprep.subr.mxu0 0.0
  %584 = vmatpush2.xpose.msra.mxu0 0.0
  %585 = vmatprep.subr.mxu0 0.0
  %586 = vmatpush2.xpose.msra.mxu0 0.0
  %587 = vmatprep.subr.mxu0 0.0
  %588 = vmatpush2.xpose.msra.mxu0 0.0
  %589 = vmatprep.subr.mxu0 0.0
  %590 = vmatpush2.xpose.msra.mxu0 0.0
  %591 = vmatprep.subr.mxu0 0.0
  %592 = vmatpush2.xpose.msra.mxu0 0.0
  %593 = vmatprep.subr.mxu0 0.0
  %594 = vmatpush2.xpose.msra.mxu0 0.0
  %595 = vmatprep.subr.mxu0 0.0
  %596 = vmatpush2.xpose.msra.mxu0 0.0
  %597 = vmatprep.subr.mxu0 0.0
  %598 = vmatpush2.xpose.msra.mxu0 0.0
  %599 = vmatprep.subr.mxu0 0.0
  %600 = vmatpush2.xpose.msra.mxu0 0.0
  %601 = vmatprep.subr.mxu0 0.0
  %602 = vmatpush2.xpose.msra.mxu0 0.0
  %603 = vmatprep.subr.mxu0 0.0
  %604 = vmatpush2.xpose.msra.mxu0 0.0
  %605 = vmatprep.subr.mxu0 0.0
  %606 = vmatpush2.xpose.msra.mxu0 0.0
  %607 = vmatprep.subr.mxu0 0.0
  %608 = vmatpush2.xpose.msra.mxu0 0.0
  %609 = vmatprep.mubr.f32.mxu0 0.0
  %610 = vmatmul.mubr.f32.gmra.mxu0 %v540
  %v611 = vpop.f32.mrf.mxu0
  %v612 = vadd.f32 0.0, %v611
  %v613 = vpop.f32.mrf.mxu0
  %614 = vdwg.mxu0
  %v615 = vsel %vm263, %v612, -inf
  %616 = vmax.xlane.f32.xlu0 %v615
  %v617 = vpop.xlane.xlu0 %616
  %vm618 = vcmp.ge.f32.partialorder %v612, %v617
  %v619 = vsel %vm618, -inf, %v612
  %v620 = vsel %vm263, %v619, -inf
  %621 = vmax.xlane.f32.xlu0 %v620
  %v622 = vpop.xlane.xlu0 %621
  %vm623 = vcmp.ge.f32.partialorder %v619, %v622
  %v624 = vsel %vm623, -inf, %v619
  %v625 = vsel %vm263, %v624, -inf
  %626 = vmax.xlane.f32.xlu0 %v625
  %v627 = vpop.xlane.xlu0 %626
  %vm628 = vcmp.ge.f32.partialorder %v612, %v627
  %v629 = vsub.f32 %v612, %v617
  %v630 = vmul.f32 %v629, 1.442695
  %v631 = vpow.pop %v630
  %v632 = vsel %vm628, %v631, 0.0
  %v633 = vsel %vm263, %v632, 0.0
  %634 = vadd.xlane.f32.xlu0 %v633
  %v635 = vpop.xlane.xlu0 %634
  %v636 = vrcp.pop %v635
  %v637 = vmul.f32 %v632, %v636
  %v638 = vpack.c.bf16 %v637, %v637
  %v640 = vsel %vm263, %v638, 0
  %642 = vmatprep.subr.bf16.mxu0 0
  %643 = vmatpush1.bf16.msra.mxu0 0
  %644 = vmatprep.subr.bf16.mxu0 0
  %645 = vmatpush1.bf16.msra.mxu0 0
  %646 = vmatprep.subr.bf16.mxu0 0
  %647 = vmatpush1.bf16.msra.mxu0 0
  %648 = vmatprep.subr.bf16.mxu0 0
  %649 = vmatpush1.bf16.msra.mxu0 0
  %650 = vmatprep.subr.bf16.mxu0 0
  %651 = vmatpush1.bf16.msra.mxu0 0
  %652 = vmatprep.subr.bf16.mxu0 0
  %653 = vmatpush1.bf16.msra.mxu0 0
  %654 = vmatprep.subr.bf16.mxu0 0
  %655 = vmatpush1.bf16.msra.mxu0 0
  %656 = vmatprep.subr.bf16.mxu0 0
  %657 = vmatpush1.bf16.msra.mxu0 %v296
  %658 = vmatprep.subr.bf16.mxu0 0
  %659 = vmatpush2.bf16.msra.mxu0 0
  %660 = vmatprep.subr.bf16.mxu0 0
  %661 = vmatpush2.bf16.msra.mxu0 0
  %662 = vmatprep.subr.bf16.mxu0 0
  %663 = vmatpush2.bf16.msra.mxu0 0
  %664 = vmatprep.subr.bf16.mxu0 0
  %665 = vmatpush2.bf16.msra.mxu0 0
  %666 = vmatprep.subr.bf16.mxu0 0
  %667 = vmatpush2.bf16.msra.mxu0 0
  %668 = vmatprep.subr.bf16.mxu0 0
  %669 = vmatpush2.bf16.msra.mxu0 0
  %670 = vmatprep.subr.bf16.mxu0 0
  %671 = vmatpush2.bf16.msra.mxu0 0
  %672 = vmatprep.subr.bf16.mxu0 0
  %673 = vmatpush2.bf16.msra.mxu0 0
  %674 = vmatprep.mubr.bf16.mxu0 0
  %675 = vmatmul.mubr.bf16.gmra.mxu0 %v640
  %v676 = vpop.f32.mrf.mxu0
  %v677 = vadd.f32 0.0, %v676
  %v678 = vpop.f32.mrf.mxu0
  %v679 = vpop.f32.mrf.mxu0
  %v680 = vpop.f32.mrf.mxu0
  %681 = vdwg.mxu0
  %v682 = vpack.c.bf16 %v677, %v677
  %s683 = scalar_lea.vmem %s4, 4
  %v684 = vld [vmem:[%s683] sm:$0xf]
  %s685 = scalar_lea.vmem %s5, 1
  %v686 = vld [vmem:[%s685] sm:$0x1]
  %v688 = vlaneseq
  %v689 = vshrl.u32 %v688, 7
  %v690 = vsub.s32 0, %v689
  %v691 = vrot.slane %v686, %v690
  %v694 = vsel %vm40, %v682, 0
  %v697 = vsel %vm350, %v684, 0
  %699 = vmatprep.subr.bf16.mxu0 0
  %700 = vmatpush1.bf16.msra.mxu0 0
  %701 = vmatprep.subr.bf16.mxu0 0
  %702 = vmatpush1.bf16.msra.mxu0 0
  %703 = vmatprep.subr.bf16.mxu0 0
  %704 = vmatpush1.bf16.msra.mxu0 0
  %705 = vmatprep.subr.bf16.mxu0 0
  %706 = vmatpush1.bf16.msra.mxu0 0
  %707 = vmatprep.subr.bf16.mxu0 0
  %708 = vmatpush1.bf16.msra.mxu0 0
  %709 = vmatprep.subr.bf16.mxu0 0
  %710 = vmatpush1.bf16.msra.mxu0 0
  %711 = vmatprep.subr.bf16.mxu0 0
  %712 = vmatpush1.bf16.msra.mxu0 0
  %713 = vmatprep.subr.bf16.mxu0 0
  %714 = vmatpush1.bf16.msra.mxu0 %v697
  %715 = vmatprep.subr.bf16.mxu0 0
  %716 = vmatpush2.bf16.msra.mxu0 0
  %717 = vmatprep.subr.bf16.mxu0 0
  %718 = vmatpush2.bf16.msra.mxu0 0
  %719 = vmatprep.subr.bf16.mxu0 0
  %720 = vmatpush2.bf16.msra.mxu0 0
  %721 = vmatprep.subr.bf16.mxu0 0
  %722 = vmatpush2.bf16.msra.mxu0 0
  %723 = vmatprep.subr.bf16.mxu0 0
  %724 = vmatpush2.bf16.msra.mxu0 0
  %725 = vmatprep.subr.bf16.mxu0 0
  %726 = vmatpush2.bf16.msra.mxu0 0
  %727 = vmatprep.subr.bf16.mxu0 0
  %728 = vmatpush2.bf16.msra.mxu0 0
  %729 = vmatprep.subr.bf16.mxu0 0
  %730 = vmatpush2.bf16.msra.mxu0 0
  %731 = vmatprep.mubr.bf16.mxu0 0
  %732 = vmatmul.mubr.bf16.gmra.mxu0 %v694
  %v733 = vpop.f32.mrf.mxu0
  %v734 = vadd.f32 %v691, %v733
  %v735 = vpop.f32.mrf.mxu0
  %v736 = vpop.f32.mrf.mxu0
  %v737 = vpop.f32.mrf.mxu0
  %738 = vdwg.mxu0
  %vm739 = vcmp.gt.f32.partialorder %v734, 0.0
  %v740 = vmul.f32 %v734, 0.01
  %v741 = vsel %vm739, %v734, %v740
  %v742 = vadd.f32 %v396, %v741
  %v743 = vpack.c.bf16 %v742, %v742
  %v744 = vld [vmem:[%s6] sm:$0xf]
  %v745 = vld [vmem:[%s6 + $0x4] sm:$0xf]
  %v746 = vld [vmem:[%s6 + $0x8] sm:$0xf]
  %v747 = vld [vmem:[%s6 + $0xc] sm:$0xf]
  %v748 = vld [vmem:[%s7] sm:$0x1]
  %v750 = vlaneseq
  %v751 = vshrl.u32 %v750, 7
  %v752 = vsub.s32 0, %v751
  %v753 = vrot.slane %v748, %v752
  %v759 = vunpack.c.l.b16 %v744
  %v760 = vunpack.c.l.b16 %v745
  %v761 = vunpack.c.l.b16 %v746
  %v762 = vunpack.c.l.b16 %v747
  %v763 = vpack.c.b16 %v760, %v759
  %v764 = vpack.c.b16 %v762, %v761
  %vm767 = vcmask 261120
  %v769 = vsel %vm767, %v743, 0
  %771 = vmatprep.subr.bf16.mxu0 0
  %772 = vmatpush1.bf16.msra.mxu0 0
  %773 = vmatprep.subr.bf16.mxu0 0
  %774 = vmatpush1.bf16.msra.mxu0 0
  %775 = vmatprep.subr.bf16.mxu0 0
  %776 = vmatpush1.bf16.msra.mxu0 0
  %777 = vmatprep.subr.bf16.mxu0 0
  %778 = vmatpush1.bf16.msra.mxu0 0
  %779 = vmatprep.subr.bf16.mxu0 0
  %780 = vmatpush1.bf16.msra.mxu0 0
  %781 = vmatprep.subr.bf16.mxu0 0
  %782 = vmatpush1.bf16.msra.mxu0 0
  %783 = vmatprep.subr.bf16.mxu0 0
  %784 = vmatpush1.bf16.msra.mxu0 %v764
  %785 = vmatprep.subr.bf16.mxu0 0
  %786 = vmatpush1.bf16.msra.mxu0 %v763
  %787 = vmatprep.subr.bf16.mxu0 0
  %788 = vmatpush2.bf16.msra.mxu0 0
  %789 = vmatprep.subr.bf16.mxu0 0
  %790 = vmatpush2.bf16.msra.mxu0 0
  %791 = vmatprep.subr.bf16.mxu0 0
  %792 = vmatpush2.bf16.msra.mxu0 0
  %793 = vmatprep.subr.bf16.mxu0 0
  %794 = vmatpush2.bf16.msra.mxu0 0
  %795 = vmatprep.subr.bf16.mxu0 0
  %796 = vmatpush2.bf16.msra.mxu0 0
  %797 = vmatprep.subr.bf16.mxu0 0
  %798 = vmatpush2.bf16.msra.mxu0 0
  %799 = vmatprep.subr.bf16.mxu0 0
  %800 = vmatpush2.bf16.msra.mxu0 0
  %801 = vmatprep.subr.bf16.mxu0 0
  %802 = vmatpush2.bf16.msra.mxu0 0
  %803 = vmatprep.mubr.bf16.mxu0 0
  %804 = vmatmul.mubr.bf16.gmra.mxu0 %v769
  %v805 = vpop.f32.mrf.mxu0
  %v806 = vadd.f32 %v753, %v805
  %v807 = vpop.f32.mrf.mxu0
  %v808 = vpop.f32.mrf.mxu0
  %v809 = vpop.f32.mrf.mxu0
  %810 = vdwg.mxu0
  %v811 = vld [vmem:[%s1] sm:$0xff]
  %v812 = vadd.f32 %v806, %v811
  %v813 = vpack.c.bf16 %v812, %v812
  %v814 = vld [vmem:[%s8] sm:$0xf]
  %v815 = vld [vmem:[%s8 + $0x4] sm:$0xf]
  %v816 = vld [vmem:[%s9] sm:$0x1]
  %v818 = vlaneseq
  %v819 = vshrl.u32 %v818, 7
  %v820 = vsub.s32 0, %v819
  %v821 = vrot.slane %v816, %v820
  %v825 = vunpack.c.l.b16 %v814
  %v826 = vunpack.c.l.b16 %v815
  %v827 = vpack.c.b16 %v826, %v825
  %vm829 = vcmask 130048
  %v831 = vsel %vm829, %v813, 0
  %833 = vmatprep.subr.bf16.mxu0 0
  %834 = vmatpush1.bf16.msra.mxu0 0
  %835 = vmatprep.subr.bf16.mxu0 0
  %836 = vmatpush1.bf16.msra.mxu0 0
  %837 = vmatprep.subr.bf16.mxu0 0
  %838 = vmatpush1.bf16.msra.mxu0 0
  %839 = vmatprep.subr.bf16.mxu0 0
  %840 = vmatpush1.bf16.msra.mxu0 0
  %841 = vmatprep.subr.bf16.mxu0 0
  %842 = vmatpush1.bf16.msra.mxu0 0
  %843 = vmatprep.subr.bf16.mxu0 0
  %844 = vmatpush1.bf16.msra.mxu0 0
  %845 = vmatprep.subr.bf16.mxu0 0
  %846 = vmatpush1.bf16.msra.mxu0 0
  %847 = vmatprep.subr.bf16.mxu0 0
  %848 = vmatpush1.bf16.msra.mxu0 %v827
  %849 = vmatprep.subr.bf16.mxu0 0
  %850 = vmatpush2.bf16.msra.mxu0 0
  %851 = vmatprep.subr.bf16.mxu0 0
  %852 = vmatpush2.bf16.msra.mxu0 0
  %853 = vmatprep.subr.bf16.mxu0 0
  %854 = vmatpush2.bf16.msra.mxu0 0
  %855 = vmatprep.subr.bf16.mxu0 0
  %856 = vmatpush2.bf16.msra.mxu0 0
  %857 = vmatprep.subr.bf16.mxu0 0
  %858 = vmatpush2.bf16.msra.mxu0 0
  %859 = vmatprep.subr.bf16.mxu0 0
  %860 = vmatpush2.bf16.msra.mxu0 0
  %861 = vmatprep.subr.bf16.mxu0 0
  %862 = vmatpush2.bf16.msra.mxu0 0
  %863 = vmatprep.subr.bf16.mxu0 0
  %864 = vmatpush2.bf16.msra.mxu0 0
  %865 = vmatprep.mubr.bf16.mxu0 0
  %866 = vmatmul.mubr.bf16.gmra.mxu0 %v831
  %v867 = vpop.f32.mrf.mxu0
  %v868 = vadd.f32 %v821, %v867
  %v869 = vpop.f32.mrf.mxu0
  %v870 = vpop.f32.mrf.mxu0
  %v871 = vpop.f32.mrf.mxu0
  %872 = vdwg.mxu0
  %873 = vst.msk [vmem:[%s10] sm:$0xff] %vm767, %v868
  // Predicated region
  $region42: #{ics_forward.4} parent=0 // pred_check
    _
  $region43: #{ics_forward.4} parent=0 // pred_check_branch
    %875 = sbr.rel (0) target = $region45
  $region44: #{ics_forward.4} parent=0 // pred_region
    _
  $region45: #{ics_forward.4} parent=0 // pred_fallthru
    _
  // Predicated region
  $region46: #{ics_forward.4} parent=0 // pred_check
    _
  $region47: #{ics_forward.4} parent=0 // pred_check_branch
    %877 = sbr.rel (0) target = $region49
  $region48: #{ics_forward.4} parent=0 // pred_region
    _
  $region49: #{ics_forward.4} parent=0 // pred_fallthru
    _

</llo_original>
